<compile_context>
chip_gen: v7x
topology: tpu7x:2x2x1
jax: 0.10.0
libtpu: 0.0.40
codegen_flags: <defaults>
</compile_context>

<pallas_src>
import math
from functools import partial

import jax
import jax.numpy as jnp
from jax import lax
from jax.experimental import pallas as pl
from jax.experimental.pallas import tpu as pltpu


def _head_kernel(x_ref, w_cls_ref, b_cls_ref, w_reg_ref, b_reg_ref,
                 cls_ref, reg_ref, *, compute_dtype, precision):
    # x_ref:     (C, TM)     activation tile (batch squeezed), lane-dense.
    # w_*_ref:   (n*, C)     per-head weights (constant block index -> VMEM-resident).
    # b_*_ref:   (n*, 1)     per-head f32 bias (lane-broadcast on add).
    # cls_ref:   (ncls, TM)  cls head output tile.
    # reg_ref:   (nreg, TM)  reg head output tile.
    #
    # In-register cast (no wrapper-side HBM cast pass). For f32 this is a no-op.
    x = x_ref[...].astype(compute_dtype)

    # Per-head dot -> bias -> cast -> store; no fused (Cout, TM) intermediate.
    cls = jnp.dot(w_cls_ref[...], x, preferred_element_type=jnp.float32,
                  precision=precision)
    cls_ref[...] = (cls + b_cls_ref[...]).astype(cls_ref.dtype)

    reg = jnp.dot(w_reg_ref[...], x, preferred_element_type=jnp.float32,
                  precision=precision)
    reg_ref[...] = (reg + b_reg_ref[...]).astype(reg_ref.dtype)


def _round_up(v, m):
    return ((v + m - 1) // m) * m


def _cdiv(a, b):
    return -(-a // b)


def _select_tile(HW, C, ncls, nreg, n_batch, x_itemsize, out_itemsize,
                 compute_itemsize, tile_m, vmem_budget_bytes):
    """Pick the lane tile tm and a matching vmem_limit_bytes."""
    cout = ncls + nreg

    def vmem_est(t):
        x_buf = 2 * C * t * x_itemsize            # double-buffered input tile
        out_buf = 2 * cout * t * out_itemsize     # double-buffered output tiles
        w = cout * C * compute_itemsize           # resident weights (const index)
        acc = cout * t * 4                        # f32 accumulators (one head at a time, be safe)
        xcast = C * t * compute_itemsize          # in-kernel cast copy
        return x_buf + out_buf + w + acc + xcast + (1 << 20)  # + slack

    if HW <= 128:
        tm = HW  # block == full spatial extent (always a legal block dim)
    else:
        # Balanced tiling: fewest tiles with tile <= tile_m, rounded up to 128,
        # so ragged-tile waste stays small (vs. clamp-to-2048 + whole-tile pad).
        n_tiles = max(1, _cdiv(HW, max(128, int(tile_m))))
        tm = _round_up(_cdiv(HW, n_tiles), 128)
        # v7x megacore: make sure both TensorCores get >= 1 grid step when possible.
        if n_batch * _cdiv(HW, tm) < 2:
            tm = _round_up(_cdiv(HW, 2), 128)
        # Shrink until the pipeline fits the VMEM budget (matters for big C / big tm).
        while tm > 128 and vmem_est(tm) > vmem_budget_bytes:
            tm -= 128

    # Scoped-VMEM limit: above v5e's 16 MiB default, below v7x's 64 MiB physical.
    vmem_limit = int(min(max(2 * vmem_est(tm), 32 << 20), 60 << 20))
    return tm, vmem_limit


def yolov8_head_forward(x_nchw, w_cls, b_cls, w_reg, b_reg, *,
                        tile_m=2048, compute_dtype=None, out_dtype=None,
                        vmem_budget_bytes=40 << 20):
    """Fused YOLOv8 head.

    x_nchw: (N, C, H, W); w_cls: (num_classes, C); w_reg: (4*reg_max, C).
    Returns (cls, reg) in NCHW, matching the PyTorch module's forward.
    """
    N, C, H, W = x_nchw.shape
    ncls = w_cls.shape[0]
    nreg = w_reg.shape[0]

    if compute_dtype is None:
        compute_dtype = x_nchw.dtype
    if out_dtype is None:
        out_dtype = x_nchw.dtype
    compute_dtype = jnp.dtype(compute_dtype)
    out_dtype = jnp.dtype(out_dtype)

    HW = H * W
    tm, vmem_limit = _select_tile(
        HW, C, ncls, nreg, N,
        jnp.dtype(x_nchw.dtype).itemsize, out_dtype.itemsize,
        compute_dtype.itemsize, tile_m, vmem_budget_bytes)
    hw_tiles = _cdiv(HW, tm)

    # NCHW -> (N, C, H*W): free reshape. No pad, no wrapper-side dtype cast.
    x3d = x_nchw.reshape(N, C, HW)

    # Weights/biases are tiny; cast once here (negligible traffic).
    w_cls_c = w_cls.astype(compute_dtype)
    w_reg_c = w_reg.astype(compute_dtype)
    b_cls_c = b_cls.astype(jnp.float32).reshape(ncls, 1)
    b_reg_c = b_reg.astype(jnp.float32).reshape(nreg, 1)

    # MXU has slack (K=C is tiny, kernel is HBM-bound): HIGHEST is free for f32 parity.
    precision = lax.Precision.HIGHEST if compute_dtype == jnp.float32 else None

    grid = (N, hw_tiles)

    cls3d, reg3d = pl.pallas_call(
        partial(_head_kernel, compute_dtype=compute_dtype, precision=precision),
        out_shape=(
            jax.ShapeDtypeStruct((N, ncls, HW), out_dtype),
            jax.ShapeDtypeStruct((N, nreg, HW), out_dtype),
        ),
        grid_spec=pltpu.PrefetchScalarGridSpec(
            num_scalar_prefetch=0,
            grid=grid,
            in_specs=[
                # Activations: tile over (batch, spatial); batch dim squeezed.
                pl.BlockSpec((pl.Squeezed(), C, tm), lambda n, j: (n, 0, j)),
                # Per-head weights + biases: constant block index -> resident, no re-DMA.
                pl.BlockSpec((ncls, C), lambda n, j: (0, 0)),
                pl.BlockSpec((ncls, 1), lambda n, j: (0, 0)),
                pl.BlockSpec((nreg, C), lambda n, j: (0, 0)),
                pl.BlockSpec((nreg, 1), lambda n, j: (0, 0)),
            ],
            out_specs=[
                pl.BlockSpec((pl.Squeezed(), ncls, tm), lambda n, j: (n, 0, j)),
                pl.BlockSpec((pl.Squeezed(), nreg, tm), lambda n, j: (n, 0, j)),
            ],
        ),
        compiler_params=pltpu.CompilerParams(
            dimension_semantics=("parallel", "parallel"),
            vmem_limit_bytes=vmem_limit),
    )(x3d, w_cls_c, b_cls_c, w_reg_c, b_reg_c)

    cls_out = cls3d.reshape(N, ncls, H, W)
    reg_out = reg3d.reshape(N, nreg, H, W)
    return cls_out, reg_out


def init_params(key, in_channels, num_classes, reg_max):
    # Deterministic synthetic init mimicking PyTorch Conv2d kaiming_uniform scale:
    # uniform in [-1/sqrt(C), 1/sqrt(C)].
    k1, k2, k3, k4 = jax.random.split(key, 4)
    bound = 1.0 / math.sqrt(in_channels)
    w_cls = jax.random.uniform(k1, (num_classes, in_channels), jnp.float32, -bound, bound)
    b_cls = jax.random.uniform(k2, (num_classes,), jnp.float32, -bound, bound)
    w_reg = jax.random.uniform(k3, (4 * reg_max, in_channels), jnp.float32, -bound, bound)
    b_reg = jax.random.uniform(k4, (4 * reg_max,), jnp.float32, -bound, bound)
    return w_cls, b_cls, w_reg, b_reg


if __name__ == "__main__":
    # Small shapes consistent with the module: N=2, C=4, H=W=16,
    # num_classes=80, reg_max=16 (module defaults).
    N, C, H, W = 2, 4, 16, 16
    num_classes, reg_max = 80, 16

    key = jax.random.PRNGKey(0)
    kx, kp, kr = jax.random.split(key, 3)
    x = jax.random.normal(kx, (N, C, H, W), jnp.float32)
    w_cls, b_cls, w_reg, b_reg = init_params(kp, C, num_classes, reg_max)

    hp = lax.Precision.HIGHEST

    def ref(xx, ww, bb):
        return jnp.einsum("nchw,oc->nohw", xx, ww, precision=hp) + bb[None, :, None, None]

    # f32 path (matches PyTorch f32 forward semantics).
    cls_out, reg_out = yolov8_head_forward(x, w_cls, b_cls, w_reg, b_reg)
    jax.block_until_ready((cls_out, reg_out))
    assert cls_out.shape == (N, num_classes, H, W)
    assert reg_out.shape == (N, 4 * reg_max, H, W)
    assert jnp.allclose(cls_out, ref(x, w_cls, b_cls), atol=1e-4), "cls mismatch (f32 path)"
    assert jnp.allclose(reg_out, ref(x, w_reg, b_reg), atol=1e-4), "reg mismatch (f32 path)"

    # Ragged spatial extent (H=W=20 -> HW=400, not a multiple of 128): exercises the
    # no-pad / masked-last-block path (2 spatial tiles of 256, last one ragged).
    Hr = Wr = 20
    xr = jax.random.normal(kr, (N, C, Hr, Wr), jnp.float32)
    cls_r, reg_r = yolov8_head_forward(xr, w_cls, b_cls, w_reg, b_reg, tile_m=256)
    jax.block_until_ready((cls_r, reg_r))
    assert cls_r.shape == (N, num_classes, Hr, Wr)
    assert reg_r.shape == (N, 4 * reg_max, Hr, Wr)
    assert jnp.allclose(cls_r, ref(xr, w_cls, b_cls), atol=1e-4), "cls mismatch (ragged path)"
    assert jnp.allclose(reg_r, ref(xr, w_reg, b_reg), atol=1e-4), "reg mismatch (ragged path)"

    # bf16 fast path: bf16 MXU compute + bf16 output stores (halves HBM write traffic,
    # the dominant roofline term here); accumulation / bias add stay f32 in-kernel.
    cls_bf, reg_bf = yolov8_head_forward(x, w_cls, b_cls, w_reg, b_reg,
                                         compute_dtype=jnp.bfloat16,
                                         out_dtype=jnp.bfloat16)
    jax.block_until_ready((cls_bf, reg_bf))
    assert jnp.allclose(cls_bf.astype(jnp.float32), ref(x, w_cls, b_cls), atol=1e-1), \
        "cls mismatch (bf16 path)"
    assert jnp.allclose(reg_bf.astype(jnp.float32), ref(x, w_reg, b_reg), atol=1e-1), \
        "reg mismatch (bf16 path)"

    print("KERNEL_OK")
</pallas_src>

<mosaic_0001>
module attributes {stable_mosaic.version = 11 : i64} {
  func.func @_head_kernel(%arg0: i32, %arg1: i32, %arg2: memref<1x4x256xf32, #tpu.memory_space<vmem>>, %arg3: memref<80x4xf32, #tpu.memory_space<vmem>>, %arg4: memref<80x1xf32, #tpu.memory_space<vmem>>, %arg5: memref<64x4xf32, #tpu.memory_space<vmem>>, %arg6: memref<64x1xf32, #tpu.memory_space<vmem>>, %arg7: memref<1x80x256xf32, #tpu.memory_space<vmem>>, %arg8: memref<1x64x256xf32, #tpu.memory_space<vmem>>) attributes {dimension_semantics = [#tpu.dimension_semantics<parallel>, #tpu.dimension_semantics<parallel>], iteration_bounds = array<i64: 2, 1>, scalar_prefetch = 0 : i64, scratch_operands = 0 : i64, tpu.core_type = #tpu.core_type<tc>, window_params = [{transform_indices = @transform_0, window_bounds = array<i64: 1, 4, 256>}, {pipeline_mode = #tpu.pipeline_mode<synchronous>, transform_indices = @transform_1, window_bounds = array<i64: 80, 4>}, {pipeline_mode = #tpu.pipeline_mode<synchronous>, transform_indices = @transform_2, window_bounds = array<i64: 80, 1>}, {pipeline_mode = #tpu.pipeline_mode<synchronous>, transform_indices = @transform_3, window_bounds = array<i64: 64, 4>}, {pipeline_mode = #tpu.pipeline_mode<synchronous>, transform_indices = @transform_4, window_bounds = array<i64: 64, 1>}, {transform_indices = @transform_5, window_bounds = array<i64: 1, 80, 256>}, {transform_indices = @transform_6, window_bounds = array<i64: 1, 64, 256>}]} {
    %c0 = arith.constant 0 : index
    %c0_0 = arith.constant 0 : index
    %c0_1 = arith.constant 0 : index
    %0 = vector.load %arg2[%c0, %c0_0, %c0_1] : memref<1x4x256xf32, #tpu.memory_space<vmem>>, vector<1x4x256xf32>
    %1 = vector.shape_cast %0 : vector<1x4x256xf32> to vector<4x256xf32>
    %c0_2 = arith.constant 0 : index
    %c0_3 = arith.constant 0 : index
    %2 = vector.load %arg3[%c0_2, %c0_3] : memref<80x4xf32, #tpu.memory_space<vmem>>, vector<80x4xf32>
    %cst = arith.constant dense<0.000000e+00> : vector<80x256xf32>
    %3 = tpu.matmul %2, %1, %cst {dimension_numbers = #tpu.dot_dimension_numbers<[1], [0], [0], [1], [0, 0, 1, 1], [], []>, precision = #tpu.contract_precision<fp32>} : vector<80x4xf32>, vector<4x256xf32>, vector<80x256xf32> -> vector<80x256xf32>
    %c0_4 = arith.constant 0 : index
    %c0_5 = arith.constant 0 : index
    %4 = vector.load %arg4[%c0_4, %c0_5] : memref<80x1xf32, #tpu.memory_space<vmem>>, vector<80x1xf32>
    %5 = vector.broadcast %4 : vector<80x1xf32> to vector<80x256xf32>
    %6 = arith.addf %3, %5 : vector<80x256xf32>
    %c0_6 = arith.constant 0 : index
    %c0_7 = arith.constant 0 : index
    %c0_8 = arith.constant 0 : index
    %7 = vector.load %arg7[%c0_6, %c0_7, %c0_8] : memref<1x80x256xf32, #tpu.memory_space<vmem>>, vector<1x80x256xf32>
    %8 = vector.shape_cast %7 : vector<1x80x256xf32> to vector<80x256xf32>
    %9 = vector.shape_cast %6 : vector<80x256xf32> to vector<1x80x256xf32>
    tpu.vector_store %arg7[%c0_6, %c0_7, %c0_8], %9 {strides = array<i32>} : memref<1x80x256xf32, #tpu.memory_space<vmem>>, vector<1x80x256xf32>,
    %c0_9 = arith.constant 0 : index
    %c0_10 = arith.constant 0 : index
    %10 = vector.load %arg5[%c0_9, %c0_10] : memref<64x4xf32, #tpu.memory_space<vmem>>, vector<64x4xf32>
    %cst_11 = arith.constant dense<0.000000e+00> : vector<64x256xf32>
    %11 = tpu.matmul %10, %1, %cst_11 {dimension_numbers = #tpu.dot_dimension_numbers<[1], [0], [0], [1], [0, 0, 1, 1], [], []>, precision = #tpu.contract_precision<fp32>} : vector<64x4xf32>, vector<4x256xf32>, vector<64x256xf32> -> vector<64x256xf32>
    %c0_12 = arith.constant 0 : index
    %c0_13 = arith.constant 0 : index
    %12 = vector.load %arg6[%c0_12, %c0_13] : memref<64x1xf32, #tpu.memory_space<vmem>>, vector<64x1xf32>
    %13 = vector.broadcast %12 : vector<64x1xf32> to vector<64x256xf32>
    %14 = arith.addf %11, %13 : vector<64x256xf32>
    %c0_14 = arith.constant 0 : index
    %c0_15 = arith.constant 0 : index
    %c0_16 = arith.constant 0 : index
    %15 = vector.load %arg8[%c0_14, %c0_15, %c0_16] : memref<1x64x256xf32, #tpu.memory_space<vmem>>, vector<1x64x256xf32>
    %16 = vector.shape_cast %15 : vector<1x64x256xf32> to vector<64x256xf32>
    %17 = vector.shape_cast %14 : vector<64x256xf32> to vector<1x64x256xf32>
    tpu.vector_store %arg8[%c0_14, %c0_15, %c0_16], %17 {strides = array<i32>} : memref<1x64x256xf32, #tpu.memory_space<vmem>>, vector<1x64x256xf32>,
    return
  }
  func.func @transform_0(%arg0: i32, %arg1: i32) -> (i32, i32, i32) {
    %c0_i32 = arith.constant 0 : i32
    %c0_i32_0 = arith.constant 0 : i32
    return %arg0, %c0_i32, %arg1 : i32, i32, i32
  }
  func.func @transform_1(%arg0: i32, %arg1: i32) -> (i32, i32) {
    %c0_i32 = arith.constant 0 : i32
    %c0_i32_0 = arith.constant 0 : i32
    %c0_i32_1 = arith.constant 0 : i32
    return %c0_i32, %c0_i32_0 : i32, i32
  }
  func.func @transform_2(%arg0: i32, %arg1: i32) -> (i32, i32) {
    %c0_i32 = arith.constant 0 : i32
    %c0_i32_0 = arith.constant 0 : i32
    %c0_i32_1 = arith.constant 0 : i32
    return %c0_i32, %c0_i32_0 : i32, i32
  }
  func.func @transform_3(%arg0: i32, %arg1: i32) -> (i32, i32) {
    %c0_i32 = arith.constant 0 : i32
    %c0_i32_0 = arith.constant 0 : i32
    %c0_i32_1 = arith.constant 0 : i32
    return %c0_i32, %c0_i32_0 : i32, i32
  }
  func.func @transform_4(%arg0: i32, %arg1: i32) -> (i32, i32) {
    %c0_i32 = arith.constant 0 : i32
    %c0_i32_0 = arith.constant 0 : i32
    %c0_i32_1 = arith.constant 0 : i32
    return %c0_i32, %c0_i32_0 : i32, i32
  }
  func.func @transform_5(%arg0: i32, %arg1: i32) -> (i32, i32, i32) {
    %c0_i32 = arith.constant 0 : i32
    %c0_i32_0 = arith.constant 0 : i32
    return %arg0, %c0_i32, %arg1 : i32, i32, i32
  }
  func.func @transform_6(%arg0: i32, %arg1: i32) -> (i32, i32, i32) {
    %c0_i32 = arith.constant 0 : i32
    %c0_i32_0 = arith.constant 0 : i32
    return %arg0, %c0_i32, %arg1 : i32, i32, i32
  }
}

</mosaic_0001>

<llo_original>
// kernel: tpu_custom_call.1
$region0: #{tpu_custom_call.1}
  #allocation0 [shape = 'u32[]', space=smem, size = 0x4, offset = 0x4, fixed_abs, tag = 'smem constant byte address 0x4 - core index']
  #allocation1 [shape = 'u32[144,128]{1,0:T(1,128)}', space=vmem, size = 0x12000, scoped, tag = 'internal scratch']
  %s0 = inlined_call_operand.vmem [shape: f32[2,4,256], index: 0, kind: input, shape index: {}]
  %s1 = inlined_call_operand.vmem [shape: f32[80,4], index: 1, kind: input, shape index: {}]
  %s2 = inlined_call_operand.vmem [shape: f32[80,1], index: 2, kind: input, shape index: {}]
  %s3 = inlined_call_operand.vmem [shape: f32[64,4], index: 3, kind: input, shape index: {}]
  %s4 = inlined_call_operand.vmem [shape: f32[64,1], index: 4, kind: input, shape index: {}]
  %s5 = inlined_call_operand.hbm [shape: f32[2,80,256], index: 5, kind: output, shape index: {0}]
  %s6 = inlined_call_operand.hbm [shape: f32[2,64,256], index: 6, kind: output, shape index: {1}]
  %7 = xla_tuple %s5, %s6
  %s8 = sld [smem:[#allocation0]]
  $region61: #{tpu_custom_call.1} parent=0
    _
  %s10 = ssub.s32 1, %s8
  %s11 = scalar_select 0, %s10, %s8
  $region1: #{tpu_custom_call.1} parent=0
    #allocation2 [shape = 'u8[163840]{0}', space=vmem, size = 0x28000, scoped, tag = 'output window, operand 0']
    #allocation3 [shape = 's32[2]{0}', space=sflag, size = 0x8, scoped, tag = 'scoped memory for tpu_custom_call.1']
    #allocation4 [shape = 'u8[131072]{0}', space=vmem, size = 0x20000, scoped, tag = 'output window, operand 1']
    #allocation5 [shape = 's32[2]{0}', space=sflag, size = 0x8, scoped, tag = 'scoped memory for tpu_custom_call.1']
    %12 = vsyncpa [#allocation3], 0
    %s13 = scalar_lea.sflag [#allocation3], 1
    %14 = vsyncpa %s13, 0
    %15 = vsyncpa [#allocation5], 0
    %s16 = scalar_lea.sflag [#allocation5], 1
    %17 = vsyncpa %s16, 0
    loop: start=0, step=1, limit=4
    $region2: #{tpu_custom_call.1} parent=1 // loop_pre_header
      _
    $region3: #{tpu_custom_call.1} parent=1 // loop_header
      %s19 = sphi 0, %s23
      %p20 = scmp.ge.s32.totalorder %s19, 4
      %s26 = sphi 0, %s38
      %s27 = sphi 0, %s34
      %s28 = sphi 0, %s26
      %s29 = sphi 0, %s27
      %s30 = sphi 0, %s28
      %s31 = sphi 0, %s29
      %s43 = sphi 0, %s45
      %s46 = sphi 0, %s43
      %s47 = sphi 0, %s46
      %s63 = sphi 0, %s47
      %s67 = sphi 0, %s67
      %s69 = sphi 0, %s67
      %s70 = sphi 0, %s69
      %s84 = sphi 0, %s70
      %s88 = sphi 0, %s88
      %s90 = sphi 0, %s88
      %s91 = sphi 0, %s90
      %s105 = sphi 0, %s91
      %s109 = sphi 0, %s109
      %s111 = sphi 0, %s109
      %s112 = sphi 0, %s111
      %s126 = sphi 0, %s112
      %s130 = sphi 0, %s130
      %s132 = sphi 0, %s130
      %s133 = sphi 0, %s132
      %s147 = sphi 0, %s133
      %s155 = sphi 0, %s157
      %s158 = sphi 0, %s155
      %s159 = sphi 0, %s158
      %s175 = sphi 0, %s159
      %s183 = sphi 0, %s185
      %s186 = sphi 0, %s183
      %s187 = sphi 0, %s186
      %s203 = sphi 0, %s187
    $region4: #{tpu_custom_call.1} parent=1 // loop_header_branch
      %22 = sbr.rel (%p20) target = $region8
    $region5: #{tpu_custom_call.1} parent=1 // loop_body
      %s24 = ssub.s32 %s19, 1
      %s25 = ssub.s32 %s19, 2
      %s32 = sadd.s32 1, %s27
      %p33 = scmp.ge.s32.totalorder %s32, 1
      %s34 = scalar_select %p33, 0, %s32
      %s35 = sadd.s32 1, %s26
      %s36 = scalar_select %p33, %s35, %s26
      %p37 = scmp.ge.s32.totalorder %s36, 2
      %s38 = scalar_select %p37, 0, %s36
      %s39 = ssub.s32 %s26, %s38
      %s40 = ssub.s32 %s27, %s34
      %s41 = sor.u32 %s39, %s40
      %p42 = scmp.eq.s32.totalorder %s41, 0
      %s44 = sadd.s32 %s43, 1
      %s45 = scalar_select %p42, %s43, %s44
      %p48 = pneg %p42
      %p49 = scmp.eq.s32.totalorder %s19, 1
      %p50 = por %p48, %p49
      %p51 = scmp.ne.s32.totalorder %s43, %s46
      %p52 = scmp.eq.s32.totalorder %s19, 0
      %p53 = por %p51, %p52
      %p54 = scmp.ne.s32.totalorder %s43, %s46
      %p55 = scmp.eq.s32.totalorder %s24, 1
      %p56 = por %p54, %p55
      %p57 = scmp.ne.s32.totalorder %s46, %s47
      %p58 = scmp.eq.s32.totalorder %s24, 0
      %p59 = por %p57, %p58
      %p60 = scmp.ne.s32.totalorder %s46, %s47
      %p61 = scmp.eq.s32.totalorder %s25, 1
      %p62 = por %p60, %p61
      %p64 = scmp.ne.s32.totalorder %s47, %s63
      %p65 = scmp.eq.s32.totalorder %s25, 0
      %p66 = por %p64, %p65
      %s68 = sadd.s32 %s67, 1
      %p71 = scmp.eq.s32.totalorder %s19, 1
      %p72 = scmp.ne.s32.totalorder %s67, %s69
      %p73 = scmp.eq.s32.totalorder %s19, 0
      %p74 = por %p72, %p73
      %p75 = scmp.ne.s32.totalorder %s67, %s69
      %p76 = scmp.eq.s32.totalorder %s24, 1
      %p77 = por %p75, %p76
      %p78 = scmp.ne.s32.totalorder %s69, %s70
      %p79 = scmp.eq.s32.totalorder %s24, 0
      %p80 = por %p78, %p79
      %p81 = scmp.ne.s32.totalorder %s69, %s70
      %p82 = scmp.eq.s32.totalorder %s25, 1
      %p83 = por %p81, %p82
      %p85 = scmp.ne.s32.totalorder %s70, %s84
      %p86 = scmp.eq.s32.totalorder %s25, 0
      %p87 = por %p85, %p86
      %s89 = sadd.s32 %s88, 1
      %p92 = scmp.eq.s32.totalorder %s19, 1
      %p93 = scmp.ne.s32.totalorder %s88, %s90
      %p94 = scmp.eq.s32.totalorder %s19, 0
      %p95 = por %p93, %p94
      %p96 = scmp.ne.s32.totalorder %s88, %s90
      %p97 = scmp.eq.s32.totalorder %s24, 1
      %p98 = por %p96, %p97
      %p99 = scmp.ne.s32.totalorder %s90, %s91
      %p100 = scmp.eq.s32.totalorder %s24, 0
      %p101 = por %p99, %p100
      %p102 = scmp.ne.s32.totalorder %s90, %s91
      %p103 = scmp.eq.s32.totalorder %s25, 1
      %p104 = por %p102, %p103
      %p106 = scmp.ne.s32.totalorder %s91, %s105
      %p107 = scmp.eq.s32.totalorder %s25, 0
      %p108 = por %p106, %p107
      %s110 = sadd.s32 %s109, 1
      %p113 = scmp.eq.s32.totalorder %s19, 1
      %p114 = scmp.ne.s32.totalorder %s109, %s111
      %p115 = scmp.eq.s32.totalorder %s19, 0
      %p116 = por %p114, %p115
      %p117 = scmp.ne.s32.totalorder %s109, %s111
      %p118 = scmp.eq.s32.totalorder %s24, 1
      %p119 = por %p117, %p118
      %p120 = scmp.ne.s32.totalorder %s111, %s112
      %p121 = scmp.eq.s32.totalorder %s24, 0
      %p122 = por %p120, %p121
      %p123 = scmp.ne.s32.totalorder %s111, %s112
      %p124 = scmp.eq.s32.totalorder %s25, 1
      %p125 = por %p123, %p124
      %p127 = scmp.ne.s32.totalorder %s112, %s126
      %p128 = scmp.eq.s32.totalorder %s25, 0
      %p129 = por %p127, %p128
      %s131 = sadd.s32 %s130, 1
      %p134 = scmp.eq.s32.totalorder %s19, 1
      %p135 = scmp.ne.s32.totalorder %s130, %s132
      %p136 = scmp.eq.s32.totalorder %s19, 0
      %p137 = por %p135, %p136
      %p138 = scmp.ne.s32.totalorder %s130, %s132
      %p139 = scmp.eq.s32.totalorder %s24, 1
      %p140 = por %p138, %p139
      %p141 = scmp.ne.s32.totalorder %s132, %s133
      %p142 = scmp.eq.s32.totalorder %s24, 0
      %p143 = por %p141, %p142
      %p144 = scmp.ne.s32.totalorder %s132, %s133
      %p145 = scmp.eq.s32.totalorder %s25, 1
      %p146 = por %p144, %p145
      %p148 = scmp.ne.s32.totalorder %s133, %s147
      %p149 = scmp.eq.s32.totalorder %s25, 0
      %p150 = por %p148, %p149
      %s151 = ssub.s32 %s26, %s38
      %s152 = ssub.s32 %s27, %s34
      %s153 = sor.u32 %s151, %s152
      %p154 = scmp.eq.s32.totalorder %s153, 0
      %s156 = sadd.s32 %s155, 1
      %s157 = scalar_select %p154, %s155, %s156
      %p160 = pneg %p154
      %p161 = scmp.eq.s32.totalorder %s19, 1
      %p162 = por %p160, %p161
      %p163 = scmp.ne.s32.totalorder %s155, %s158
      %p164 = scmp.eq.s32.totalorder %s19, 0
      %p165 = por %p163, %p164
      %p166 = scmp.ne.s32.totalorder %s155, %s158
      %p167 = scmp.eq.s32.totalorder %s24, 1
      %p168 = por %p166, %p167
      %p169 = scmp.ne.s32.totalorder %s158, %s159
      %p170 = scmp.eq.s32.totalorder %s24, 0
      %p171 = por %p169, %p170
      %p172 = scmp.ne.s32.totalorder %s158, %s159
      %p173 = scmp.eq.s32.totalorder %s25, 1
      %p174 = por %p172, %p173
      %p176 = scmp.ne.s32.totalorder %s159, %s175
      %p177 = scmp.eq.s32.totalorder %s25, 0
      %p178 = por %p176, %p177
      %s179 = ssub.s32 %s26, %s38
      %s180 = ssub.s32 %s27, %s34
      %s181 = sor.u32 %s179, %s180
      %p182 = scmp.eq.s32.totalorder %s181, 0
      %s184 = sadd.s32 %s183, 1
      %s185 = scalar_select %p182, %s183, %s184
      %p188 = pneg %p182
      %p189 = scmp.eq.s32.totalorder %s19, 1
      %p190 = por %p188, %p189
      %p191 = scmp.ne.s32.totalorder %s183, %s186
      %p192 = scmp.eq.s32.totalorder %s19, 0
      %p193 = por %p191, %p192
      %p194 = scmp.ne.s32.totalorder %s183, %s186
      %p195 = scmp.eq.s32.totalorder %s24, 1
      %p196 = por %p194, %p195
      %p197 = scmp.ne.s32.totalorder %s186, %s187
      %p198 = scmp.eq.s32.totalorder %s24, 0
      %p199 = por %p197, %p198
      %p200 = scmp.ne.s32.totalorder %s186, %s187
      %p201 = scmp.eq.s32.totalorder %s25, 1
      %p202 = por %p200, %p201
      %p204 = scmp.ne.s32.totalorder %s187, %s203
      %p205 = scmp.eq.s32.totalorder %s25, 0
      %p206 = por %p204, %p205
      %p207 = scmp.le.s32.totalorder 1, %s19
      %p208 = scmp.lt.s32.totalorder %s19, 3
      %p209 = pnand %p207, %p208
      %p210 = pneg %p209
      // Predicated region
      $region9: #{tpu_custom_call.1} parent=5 // pred_check
        _
      $region10: #{tpu_custom_call.1} parent=5 // pred_check_branch
        %212 = sbr.rel (%p209) target = $region12
      $region11: #{tpu_custom_call.1} parent=5 // pred_region
        %s213 = ssub.s32 %s19, 1
        // Predicated region
        $region13: #{tpu_custom_call.1} parent=11 // pred_check
          %p214 = pneg %p80
        $region14: #{tpu_custom_call.1} parent=11 // pred_check_branch
          %216 = sbr.rel (%p214) target = $region16
        $region15: #{tpu_custom_call.1} parent=11 // pred_region
          _
        $region16: #{tpu_custom_call.1} parent=11 // pred_fallthru
          _
        // Predicated region
        $region17: #{tpu_custom_call.1} parent=11 // pred_check
          %p217 = pneg %p101
        $region18: #{tpu_custom_call.1} parent=11 // pred_check_branch
          %219 = sbr.rel (%p217) target = $region20
        $region19: #{tpu_custom_call.1} parent=11 // pred_region
          _
        $region20: #{tpu_custom_call.1} parent=11 // pred_fallthru
          _
        // Predicated region
        $region21: #{tpu_custom_call.1} parent=11 // pred_check
          %p220 = pneg %p122
        $region22: #{tpu_custom_call.1} parent=11 // pred_check_branch
          %222 = sbr.rel (%p220) target = $region24
        $region23: #{tpu_custom_call.1} parent=11 // pred_region
          _
        $region24: #{tpu_custom_call.1} parent=11 // pred_fallthru
          _
        // Predicated region
        $region25: #{tpu_custom_call.1} parent=11 // pred_check
          %p223 = pneg %p143
        $region26: #{tpu_custom_call.1} parent=11 // pred_check_branch
          %225 = sbr.rel (%p223) target = $region28
        $region27: #{tpu_custom_call.1} parent=11 // pred_region
          _
        $region28: #{tpu_custom_call.1} parent=11 // pred_fallthru
          _
      $region12: #{tpu_custom_call.1} parent=5 // pred_fallthru
        _
      %p226 = scmp.lt.s32.totalorder %s19, 2
      // Predicated region
      $region29: #{tpu_custom_call.1} parent=5 // pred_check
        %p227 = pneg %p226
      $region30: #{tpu_custom_call.1} parent=5 // pred_check_branch
        %229 = sbr.rel (%p227) target = $region32
      $region31: #{tpu_custom_call.1} parent=5 // pred_region
        // Predicated region
        $region33: #{tpu_custom_call.1} parent=31 // pred_check
          %p230 = pneg %p53
        $region34: #{tpu_custom_call.1} parent=31 // pred_check_branch
          %232 = sbr.rel (%p230) target = $region36
        $region35: #{tpu_custom_call.1} parent=31 // pred_region
          %s233 = smul.u32 2, %s27
          %p234 = scmp.lt.s32.totalorder %s26, 1
          %s235 = scalar_select %p234, %s26, 1
          %p236 = scmp.lt.s32.totalorder %s233, 1
          %s237 = scalar_select %p236, %s233, 1
          %s238 = smul.addr %s235, 2
          %s239 = sadd.s32 %s237, %s238
          %s240 = smul.addr %s239, 4
          %s241 = scalar_lea.vmem %s0, %s240
          %s242 = smul.u32 2, %s27
        $region36: #{tpu_custom_call.1} parent=31 // pred_fallthru
          _
      $region32: #{tpu_custom_call.1} parent=5 // pred_fallthru
        _
      %p243 = scmp.le.s32.totalorder 1, %s19
      %p244 = scmp.lt.s32.totalorder %s19, 3
      %p245 = pnand %p243, %p244
      %p246 = pneg %p245
      // Predicated region
      $region37: #{tpu_custom_call.1} parent=5 // pred_check
        _
      $region38: #{tpu_custom_call.1} parent=5 // pred_check_branch
        %248 = sbr.rel (%p245) target = $region40
      $region39: #{tpu_custom_call.1} parent=5 // pred_region
        %s249 = ssub.s32 %s19, 1
        %s250 = smul.u32 2, %s29
        %p251 = scmp.lt.s32.totalorder %s28, 1
        %s252 = scalar_select %p251, %s28, 1
        %p253 = scmp.lt.s32.totalorder %s250, 1
        %s254 = scalar_select %p253, %s250, 1
        %s255 = smul.addr %s252, 2
        %s256 = sadd.s32 %s254, %s255
        %s257 = smul.addr %s256, 4
        %s258 = scalar_lea.vmem %s0, %s257
        %p259 = pneg %p59
        %p260 = pneg %p56
        %p261 = pneg %p80
        %p262 = pneg %p77
        %p263 = pneg %p101
        %p264 = pneg %p98
        %p265 = pneg %p122
        %p266 = pneg %p119
        %p267 = pneg %p143
        %p268 = pneg %p140
        %p269 = pneg %p171
        %p270 = pneg %p168
        %s271 = sand.u32 %s158, 1
        %s272 = scalar_lea.sflag [#allocation3], %s271
        %s273 = sand.u32 %s158, 1
        %s274 = smul.addr %s273, 160
        %s275 = scalar_lea.vmem [#allocation2], %s274
        %p276 = pneg %p199
        %p277 = pneg %p196
        %s278 = sand.u32 %s186, 1
        %s279 = scalar_lea.sflag [#allocation5], %s278
        %s280 = sand.u32 %s186, 1
        %s281 = smul.addr %s280, 128
        %s282 = scalar_lea.vmem [#allocation4], %s281
        %s283 = smul.u32 2, %s29
        %p284 = scmp.lt.s32.totalorder %s28, 1
        %s285 = scalar_select %p284, %s28, 1
        %p286 = scmp.lt.s32.totalorder %s283, 1
        %s287 = scalar_select %p286, %s283, 1
        %s288 = smul.addr %s285, 2
        %s289 = sadd.s32 %s287, %s288
        %s290 = smul.addr %s289, 4
        %s291 = scalar_lea.vmem %s0, %s290
        %s292 = smul.u32 2, %s29
        %s293 = smul.u32 2, %s29
        %s294 = smul.u32 2, %s29
        %v295 = vld [vmem:[%s291] sm:$0xff]
        %v296 = vld [vmem:[%s1] sm:$0xff]
        %v297 = vld [vmem:[%s1 + $0x8] sm:$0xff]
        %v298 = vld [vmem:[%s1 + $0x10] sm:$0xff]
        %v299 = vld [vmem:[%s1 + $0x18] sm:$0xff]
        %v300 = vld [vmem:[%s1 + $0x20] sm:$0xff]
        %v301 = vld [vmem:[%s1 + $0x28] sm:$0xff]
        %v302 = vld [vmem:[%s1 + $0x30] sm:$0xff]
        %v303 = vld [vmem:[%s1 + $0x38] sm:$0xff]
        %v304 = vld [vmem:[%s1 + $0x40] sm:$0xff]
        %v305 = vld [vmem:[%s1 + $0x48] sm:$0xff]
        %v306 = vld [vmem:[%s2] sm:$0xff]
        %v307 = vld [vmem:[%s2 + $0x8] sm:$0xff]
        %v308 = vld [vmem:[%s2 + $0x10] sm:$0xff]
        %v309 = vld [vmem:[%s2 + $0x18] sm:$0xff]
        %v310 = vld [vmem:[%s2 + $0x20] sm:$0xff]
        %v311 = vld [vmem:[%s2 + $0x28] sm:$0xff]
        %v312 = vld [vmem:[%s2 + $0x30] sm:$0xff]
        %v313 = vld [vmem:[%s2 + $0x38] sm:$0xff]
        %v314 = vld [vmem:[%s2 + $0x40] sm:$0xff]
        %v315 = vld [vmem:[%s2 + $0x48] sm:$0xff]
        %317 = vset.pattern.permute.xlu0 0
        %318 = vperm.xlu0 %317, %v306
        %v319 = vpop.permute.xlu0 %318
        %322 = vset.pattern.permute.xlu0 0
        %323 = vperm.xlu0 %322, %v307
        %v324 = vpop.permute.xlu0 %323
        %327 = vset.pattern.permute.xlu0 0
        %328 = vperm.xlu0 %327, %v308
        %v329 = vpop.permute.xlu0 %328
        %332 = vset.pattern.permute.xlu0 0
        %333 = vperm.xlu0 %332, %v309
        %v334 = vpop.permute.xlu0 %333
        %337 = vset.pattern.permute.xlu0 0
        %338 = vperm.xlu0 %337, %v310
        %v339 = vpop.permute.xlu0 %338
        %342 = vset.pattern.permute.xlu0 0
        %343 = vperm.xlu0 %342, %v311
        %v344 = vpop.permute.xlu0 %343
        %347 = vset.pattern.permute.xlu0 0
        %348 = vperm.xlu0 %347, %v312
        %v349 = vpop.permute.xlu0 %348
        %352 = vset.pattern.permute.xlu0 0
        %353 = vperm.xlu0 %352, %v313
        %v354 = vpop.permute.xlu0 %353
        %357 = vset.pattern.permute.xlu0 0
        %358 = vperm.xlu0 %357, %v314
        %v359 = vpop.permute.xlu0 %358
        %362 = vset.pattern.permute.xlu0 0
        %363 = vperm.xlu0 %362, %v315
        %v364 = vpop.permute.xlu0 %363
        %v367 = vcombine.high %v295, %v295
        %vm368 = vcmask 31744
        %v370 = vsel %vm368, %v296, 0
        %v373 = vsel %vm368, %v297, 0
        %v376 = vsel %vm368, %v298, 0
        %v379 = vsel %vm368, %v299, 0
        %v382 = vsel %vm368, %v300, 0
        %v385 = vsel %vm368, %v301, 0
        %v388 = vsel %vm368, %v302, 0
        %v391 = vsel %vm368, %v303, 0
        %v394 = vsel %vm368, %v304, 0
        %v397 = vsel %vm368, %v305, 0
        %vm399 = vcmask 1043456
        %v400 = vsel %vm399, %v295, 0
        %v402 = vsel %vm399, %v367, 0
        %v404 = vand.u32 %v402, 4294901760
        %405 = vmatprep.subr.mxu0 %v404
        %v406 = vand.u32 %v400, 4294901760
        %407 = vmatpush1.msra.mxu0 %v406
        %408 = vmatprep.subr.mxu0 0.0
        %409 = vmatpush1.msra.mxu0 0.0
        %410 = vmatprep.subr.mxu0 0.0
        %411 = vmatpush1.msra.mxu0 0.0
        %412 = vmatprep.subr.mxu0 0.0
        %413 = vmatpush1.msra.mxu0 0.0
        %414 = vmatprep.subr.mxu0 0.0
        %415 = vmatpush1.msra.mxu0 0.0
        %416 = vmatprep.subr.mxu0 0.0
        %417 = vmatpush1.msra.mxu0 0.0
        %418 = vmatprep.subr.mxu0 0.0
        %419 = vmatpush1.msra.mxu0 0.0
        %420 = vmatprep.subr.mxu0 0.0
        %421 = vmatpush1.msra.mxu0 0.0
        %422 = vmatprep.subr.mxu0 0.0
        %423 = vmatpush1.msra.mxu0 0.0
        %424 = vmatprep.subr.mxu0 0.0
        %425 = vmatpush1.msra.mxu0 0.0
        %426 = vmatprep.subr.mxu0 0.0
        %427 = vmatpush1.msra.mxu0 0.0
        %428 = vmatprep.subr.mxu0 0.0
        %429 = vmatpush1.msra.mxu0 0.0
        %430 = vmatprep.subr.mxu0 0.0
        %431 = vmatpush1.msra.mxu0 0.0
        %432 = vmatprep.subr.mxu0 0.0
        %433 = vmatpush1.msra.mxu0 0.0
        %434 = vmatprep.subr.mxu0 0.0
        %435 = vmatpush1.msra.mxu0 0.0
        %436 = vmatprep.subr.mxu0 0.0
        %437 = vmatpush1.msra.mxu0 0.0
        %438 = vmatprep.subr.mxu0 0.0
        %439 = vmatpush1.msra.mxu0 0.0
        %440 = vmatprep.subr.mxu0 0.0
        %441 = vmatpush1.msra.mxu0 0.0
        %442 = vmatprep.subr.mxu0 0.0
        %443 = vmatpush1.msra.mxu0 0.0
        %444 = vmatprep.subr.mxu0 0.0
        %445 = vmatpush1.msra.mxu0 0.0
        %446 = vmatprep.subr.mxu0 0.0
        %447 = vmatpush1.msra.mxu0 0.0
        %448 = vmatprep.subr.mxu0 0.0
        %449 = vmatpush1.msra.mxu0 0.0
        %450 = vmatprep.subr.mxu0 0.0
        %451 = vmatpush1.msra.mxu0 0.0
        %452 = vmatprep.subr.mxu0 0.0
        %453 = vmatpush1.msra.mxu0 0.0
        %454 = vmatprep.subr.mxu0 0.0
        %455 = vmatpush1.msra.mxu0 0.0
        %456 = vmatprep.subr.mxu0 0.0
        %457 = vmatpush1.msra.mxu0 0.0
        %458 = vmatprep.subr.mxu0 0.0
        %459 = vmatpush1.msra.mxu0 0.0
        %460 = vmatprep.subr.mxu0 0.0
        %461 = vmatpush1.msra.mxu0 0.0
        %462 = vmatprep.subr.mxu0 0.0
        %463 = vmatpush1.msra.mxu0 0.0
        %464 = vmatprep.subr.mxu0 0.0
        %465 = vmatpush1.msra.mxu0 0.0
        %466 = vmatprep.subr.mxu0 0.0
        %467 = vmatpush1.msra.mxu0 0.0
        %468 = vmatprep.subr.mxu0 0.0
        %469 = vmatpush1.msra.mxu0 0.0
        %470 = vmatprep.mubr.f32.mxu0 0.0
        %v471 = vand.u32 %v370, 4294901760
        %v472 = vsub.f32 %v370, %v471
        %v473 = vand.u32 %v472, 4294901760
        %v474 = vsub.f32 %v472, %v473
        %v475 = vand.u32 %v474, 4294901760
        %476 = vmatmul.mubr.f32.gmra.mrb[0].mxu0 %v475
        %v477 = vpop.f32.mrb[0].mxu0
        %v478 = vadd.f32 %v319, %v477
        %v479 = vpop.f32.mrb[0].mxu0
        %v480 = vadd.f32 %v319, %v479
        %481 = vmatprep.mubr.f32.mxu0 0.0
        %v482 = vand.u32 %v373, 4294901760
        %v483 = vsub.f32 %v373, %v482
        %v484 = vand.u32 %v483, 4294901760
        %v485 = vsub.f32 %v483, %v484
        %v486 = vand.u32 %v485, 4294901760
        %487 = vmatmul.mubr.f32.gmra.mrb[0].mxu0 %v486
        %v488 = vpop.f32.mrb[0].mxu0
        %v489 = vadd.f32 %v324, %v488
        %v490 = vpop.f32.mrb[0].mxu0
        %v491 = vadd.f32 %v324, %v490
        %492 = vmatprep.mubr.f32.mxu0 0.0
        %v493 = vand.u32 %v376, 4294901760
        %v494 = vsub.f32 %v376, %v493
        %v495 = vand.u32 %v494, 4294901760
        %v496 = vsub.f32 %v494, %v495
        %v497 = vand.u32 %v496, 4294901760
        %498 = vmatmul.mubr.f32.gmra.mrb[0].mxu0 %v497
        %v499 = vpop.f32.mrb[0].mxu0
        %v500 = vadd.f32 %v329, %v499
        %v501 = vpop.f32.mrb[0].mxu0
        %v502 = vadd.f32 %v329, %v501
        %503 = vmatprep.mubr.f32.mxu0 0.0
        %v504 = vand.u32 %v379, 4294901760
        %v505 = vsub.f32 %v379, %v504
        %v506 = vand.u32 %v505, 4294901760
        %v507 = vsub.f32 %v505, %v506
        %v508 = vand.u32 %v507, 4294901760
        %509 = vmatmul.mubr.f32.gmra.mrb[0].mxu0 %v508
        %v510 = vpop.f32.mrb[0].mxu0
        %v511 = vadd.f32 %v334, %v510
        %v512 = vpop.f32.mrb[0].mxu0
        %v513 = vadd.f32 %v334, %v512
        %514 = vmatprep.mubr.f32.mxu0 0.0
        %v515 = vand.u32 %v382, 4294901760
        %v516 = vsub.f32 %v382, %v515
        %v517 = vand.u32 %v516, 4294901760
        %v518 = vsub.f32 %v516, %v517
        %v519 = vand.u32 %v518, 4294901760
        %520 = vmatmul.mubr.f32.gmra.mrb[0].mxu0 %v519
        %v521 = vpop.f32.mrb[0].mxu0
        %v522 = vadd.f32 %v339, %v521
        %v523 = vpop.f32.mrb[0].mxu0
        %v524 = vadd.f32 %v339, %v523
        %525 = vmatprep.mubr.f32.mxu0 0.0
        %v526 = vand.u32 %v385, 4294901760
        %v527 = vsub.f32 %v385, %v526
        %v528 = vand.u32 %v527, 4294901760
        %v529 = vsub.f32 %v527, %v528
        %v530 = vand.u32 %v529, 4294901760
        %531 = vmatmul.mubr.f32.gmra.mrb[0].mxu0 %v530
        %v532 = vpop.f32.mrb[0].mxu0
        %v533 = vadd.f32 %v344, %v532
        %v534 = vpop.f32.mrb[0].mxu0
        %v535 = vadd.f32 %v344, %v534
        %536 = vmatprep.mubr.f32.mxu0 0.0
        %v537 = vand.u32 %v388, 4294901760
        %v538 = vsub.f32 %v388, %v537
        %v539 = vand.u32 %v538, 4294901760
        %v540 = vsub.f32 %v538, %v539
        %v541 = vand.u32 %v540, 4294901760
        %542 = vmatmul.mubr.f32.gmra.mrb[0].mxu0 %v541
        %v543 = vpop.f32.mrb[0].mxu0
        %v544 = vadd.f32 %v349, %v543
        %v545 = vpop.f32.mrb[0].mxu0
        %v546 = vadd.f32 %v349, %v545
        %547 = vmatprep.mubr.f32.mxu0 0.0
        %v548 = vand.u32 %v391, 4294901760
        %v549 = vsub.f32 %v391, %v548
        %v550 = vand.u32 %v549, 4294901760
        %v551 = vsub.f32 %v549, %v550
        %v552 = vand.u32 %v551, 4294901760
        %553 = vmatmul.mubr.f32.gmra.mrb[0].mxu0 %v552
        %v554 = vpop.f32.mrb[0].mxu0
        %v555 = vadd.f32 %v354, %v554
        %v556 = vpop.f32.mrb[0].mxu0
        %v557 = vadd.f32 %v354, %v556
        %558 = vmatprep.mubr.f32.mxu0 0.0
        %v559 = vand.u32 %v394, 4294901760
        %v560 = vsub.f32 %v394, %v559
        %v561 = vand.u32 %v560, 4294901760
        %v562 = vsub.f32 %v560, %v561
        %v563 = vand.u32 %v562, 4294901760
        %564 = vmatmul.mubr.f32.gmra.mrb[0].mxu0 %v563
        %v565 = vpop.f32.mrb[0].mxu0
        %v566 = vadd.f32 %v359, %v565
        %v567 = vpop.f32.mrb[0].mxu0
        %v568 = vadd.f32 %v359, %v567
        %569 = vmatprep.mubr.f32.mxu0 0.0
        %v570 = vand.u32 %v397, 4294901760
        %v571 = vsub.f32 %v397, %v570
        %v572 = vand.u32 %v571, 4294901760
        %v573 = vsub.f32 %v571, %v572
        %v574 = vand.u32 %v573, 4294901760
        %575 = vmatmul.mubr.f32.gmra.mrb[0].mxu0 %v574
        %v576 = vpop.f32.mrb[0].mxu0
        %v577 = vadd.f32 %v364, %v576
        %v578 = vpop.f32.mrb[0].mxu0
        %v579 = vadd.f32 %v364, %v578
        %580 = vdwg.mxu0
        %v581 = vand.u32 %v402, 4294901760
        %v582 = vsub.f32 %v402, %v581
        %v583 = vand.u32 %v582, 4294901760
        %v584 = vsub.f32 %v582, %v583
        %v585 = vand.u32 %v584, 4294901760
        %586 = vmatprep.subr.mxu0 %v585
        %v587 = vand.u32 %v400, 4294901760
        %v588 = vsub.f32 %v400, %v587
        %v589 = vand.u32 %v588, 4294901760
        %v590 = vsub.f32 %v588, %v589
        %v591 = vand.u32 %v590, 4294901760
        %592 = vmatpush1.msra.mxu0 %v591
        %593 = vmatprep.subr.mxu0 0.0
        %594 = vmatpush1.msra.mxu0 0.0
        %595 = vmatprep.subr.mxu0 0.0
        %596 = vmatpush1.msra.mxu0 0.0
        %597 = vmatprep.subr.mxu0 0.0
        %598 = vmatpush1.msra.mxu0 0.0
        %599 = vmatprep.subr.mxu0 0.0
        %600 = vmatpush1.msra.mxu0 0.0
        %601 = vmatprep.subr.mxu0 0.0
        %602 = vmatpush1.msra.mxu0 0.0
        %603 = vmatprep.subr.mxu0 0.0
        %604 = vmatpush1.msra.mxu0 0.0
        %605 = vmatprep.subr.mxu0 0.0
        %606 = vmatpush1.msra.mxu0 0.0
        %607 = vmatprep.subr.mxu0 0.0
        %608 = vmatpush1.msra.mxu0 0.0
        %609 = vmatprep.subr.mxu0 0.0
        %610 = vmatpush1.msra.mxu0 0.0
        %611 = vmatprep.subr.mxu0 0.0
        %612 = vmatpush1.msra.mxu0 0.0
        %613 = vmatprep.subr.mxu0 0.0
        %614 = vmatpush1.msra.mxu0 0.0
        %615 = vmatprep.subr.mxu0 0.0
        %616 = vmatpush1.msra.mxu0 0.0
        %617 = vmatprep.subr.mxu0 0.0
        %618 = vmatpush1.msra.mxu0 0.0
        %619 = vmatprep.subr.mxu0 0.0
        %620 = vmatpush1.msra.mxu0 0.0
        %621 = vmatprep.subr.mxu0 0.0
        %622 = vmatpush1.msra.mxu0 0.0
        %623 = vmatprep.subr.mxu0 0.0
        %624 = vmatpush1.msra.mxu0 0.0
        %625 = vmatprep.subr.mxu0 0.0
        %626 = vmatpush1.msra.mxu0 0.0
        %627 = vmatprep.subr.mxu0 0.0
        %628 = vmatpush1.msra.mxu0 0.0
        %629 = vmatprep.subr.mxu0 0.0
        %630 = vmatpush1.msra.mxu0 0.0
        %631 = vmatprep.subr.mxu0 0.0
        %632 = vmatpush1.msra.mxu0 0.0
        %633 = vmatprep.subr.mxu0 0.0
        %634 = vmatpush1.msra.mxu0 0.0
        %635 = vmatprep.subr.mxu0 0.0
        %636 = vmatpush1.msra.mxu0 0.0
        %637 = vmatprep.subr.mxu0 0.0
        %638 = vmatpush1.msra.mxu0 0.0
        %639 = vmatprep.subr.mxu0 0.0
        %640 = vmatpush1.msra.mxu0 0.0
        %641 = vmatprep.subr.mxu0 0.0
        %642 = vmatpush1.msra.mxu0 0.0
        %643 = vmatprep.subr.mxu0 0.0
        %644 = vmatpush1.msra.mxu0 0.0
        %645 = vmatprep.subr.mxu0 0.0
        %646 = vmatpush1.msra.mxu0 0.0
        %647 = vmatprep.subr.mxu0 0.0
        %648 = vmatpush1.msra.mxu0 0.0
        %649 = vmatprep.subr.mxu0 0.0
        %650 = vmatpush1.msra.mxu0 0.0
        %651 = vmatprep.subr.mxu0 0.0
        %652 = vmatpush1.msra.mxu0 0.0
        %653 = vmatprep.subr.mxu0 0.0
        %654 = vmatpush1.msra.mxu0 0.0
        %655 = vmatprep.mubr.f32.mxu0 0.0
        %v656 = vand.u32 %v370, 4294901760
        %657 = vmatmul.mubr.f32.gmra.mrb[0].mxu0 %v656
        %v658 = vpop.f32.mrb[0].mxu0
        %v659 = vadd.f32 %v478, %v658
        %v660 = vpop.f32.mrb[0].mxu0
        %v661 = vadd.f32 %v480, %v660
        %662 = vmatprep.mubr.f32.mxu0 0.0
        %v663 = vand.u32 %v373, 4294901760
        %664 = vmatmul.mubr.f32.gmra.mrb[0].mxu0 %v663
        %v665 = vpop.f32.mrb[0].mxu0
        %v666 = vadd.f32 %v489, %v665
        %v667 = vpop.f32.mrb[0].mxu0
        %v668 = vadd.f32 %v491, %v667
        %669 = vmatprep.mubr.f32.mxu0 0.0
        %v670 = vand.u32 %v376, 4294901760
        %671 = vmatmul.mubr.f32.gmra.mrb[0].mxu0 %v670
        %v672 = vpop.f32.mrb[0].mxu0
        %v673 = vadd.f32 %v500, %v672
        %v674 = vpop.f32.mrb[0].mxu0
        %v675 = vadd.f32 %v502, %v674
        %676 = vmatprep.mubr.f32.mxu0 0.0
        %v677 = vand.u32 %v379, 4294901760
        %678 = vmatmul.mubr.f32.gmra.mrb[0].mxu0 %v677
        %v679 = vpop.f32.mrb[0].mxu0
        %v680 = vadd.f32 %v511, %v679
        %v681 = vpop.f32.mrb[0].mxu0
        %v682 = vadd.f32 %v513, %v681
        %683 = vmatprep.mubr.f32.mxu0 0.0
        %v684 = vand.u32 %v382, 4294901760
        %685 = vmatmul.mubr.f32.gmra.mrb[0].mxu0 %v684
        %v686 = vpop.f32.mrb[0].mxu0
        %v687 = vadd.f32 %v522, %v686
        %v688 = vpop.f32.mrb[0].mxu0
        %v689 = vadd.f32 %v524, %v688
        %690 = vmatprep.mubr.f32.mxu0 0.0
        %v691 = vand.u32 %v385, 4294901760
        %692 = vmatmul.mubr.f32.gmra.mrb[0].mxu0 %v691
        %v693 = vpop.f32.mrb[0].mxu0
        %v694 = vadd.f32 %v533, %v693
        %v695 = vpop.f32.mrb[0].mxu0
        %v696 = vadd.f32 %v535, %v695
        %697 = vmatprep.mubr.f32.mxu0 0.0
        %v698 = vand.u32 %v388, 4294901760
        %699 = vmatmul.mubr.f32.gmra.mrb[0].mxu0 %v698
        %v700 = vpop.f32.mrb[0].mxu0
        %v701 = vadd.f32 %v544, %v700
        %v702 = vpop.f32.mrb[0].mxu0
        %v703 = vadd.f32 %v546, %v702
        %704 = vmatprep.mubr.f32.mxu0 0.0
        %v705 = vand.u32 %v391, 4294901760
        %706 = vmatmul.mubr.f32.gmra.mrb[0].mxu0 %v705
        %v707 = vpop.f32.mrb[0].mxu0
        %v708 = vadd.f32 %v555, %v707
        %v709 = vpop.f32.mrb[0].mxu0
        %v710 = vadd.f32 %v557, %v709
        %711 = vmatprep.mubr.f32.mxu0 0.0
        %v712 = vand.u32 %v394, 4294901760
        %713 = vmatmul.mubr.f32.gmra.mrb[0].mxu0 %v712
        %v714 = vpop.f32.mrb[0].mxu0
        %v715 = vadd.f32 %v566, %v714
        %v716 = vpop.f32.mrb[0].mxu0
        %v717 = vadd.f32 %v568, %v716
        %718 = vmatprep.mubr.f32.mxu0 0.0
        %v719 = vand.u32 %v397, 4294901760
        %720 = vmatmul.mubr.f32.gmra.mrb[0].mxu0 %v719
        %v721 = vpop.f32.mrb[0].mxu0
        %v722 = vadd.f32 %v577, %v721
        %v723 = vpop.f32.mrb[0].mxu0
        %v724 = vadd.f32 %v579, %v723
        %725 = vdwg.mxu0
        %v726 = vand.u32 %v402, 4294901760
        %v727 = vsub.f32 %v402, %v726
        %728 = vmatprep.subr.mxu0 %v727
        %v729 = vand.u32 %v400, 4294901760
        %v730 = vsub.f32 %v400, %v729
        %731 = vmatpush1.msra.mxu0 %v730
        %732 = vmatprep.subr.mxu0 0.0
        %733 = vmatpush1.msra.mxu0 0.0
        %734 = vmatprep.subr.mxu0 0.0
        %735 = vmatpush1.msra.mxu0 0.0
        %736 = vmatprep.subr.mxu0 0.0
        %737 = vmatpush1.msra.mxu0 0.0
        %738 = vmatprep.subr.mxu0 0.0
        %739 = vmatpush1.msra.mxu0 0.0
        %740 = vmatprep.subr.mxu0 0.0
        %741 = vmatpush1.msra.mxu0 0.0
        %742 = vmatprep.subr.mxu0 0.0
        %743 = vmatpush1.msra.mxu0 0.0
        %744 = vmatprep.subr.mxu0 0.0
        %745 = vmatpush1.msra.mxu0 0.0
        %746 = vmatprep.subr.mxu0 0.0
        %747 = vmatpush1.msra.mxu0 0.0
        %748 = vmatprep.subr.mxu0 0.0
        %749 = vmatpush1.msra.mxu0 0.0
        %750 = vmatprep.subr.mxu0 0.0
        %751 = vmatpush1.msra.mxu0 0.0
        %752 = vmatprep.subr.mxu0 0.0
        %753 = vmatpush1.msra.mxu0 0.0
        %754 = vmatprep.subr.mxu0 0.0
        %755 = vmatpush1.msra.mxu0 0.0
        %756 = vmatprep.subr.mxu0 0.0
        %757 = vmatpush1.msra.mxu0 0.0
        %758 = vmatprep.subr.mxu0 0.0
        %759 = vmatpush1.msra.mxu0 0.0
        %760 = vmatprep.subr.mxu0 0.0
        %761 = vmatpush1.msra.mxu0 0.0
        %762 = vmatprep.subr.mxu0 0.0
        %763 = vmatpush1.msra.mxu0 0.0
        %764 = vmatprep.subr.mxu0 0.0
        %765 = vmatpush1.msra.mxu0 0.0
        %766 = vmatprep.subr.mxu0 0.0
        %767 = vmatpush1.msra.mxu0 0.0
        %768 = vmatprep.subr.mxu0 0.0
        %769 = vmatpush1.msra.mxu0 0.0
        %770 = vmatprep.subr.mxu0 0.0
        %771 = vmatpush1.msra.mxu0 0.0
        %772 = vmatprep.subr.mxu0 0.0
        %773 = vmatpush1.msra.mxu0 0.0
        %774 = vmatprep.subr.mxu0 0.0
        %775 = vmatpush1.msra.mxu0 0.0
        %776 = vmatprep.subr.mxu0 0.0
        %777 = vmatpush1.msra.mxu0 0.0
        %778 = vmatprep.subr.mxu0 0.0
        %779 = vmatpush1.msra.mxu0 0.0
        %780 = vmatprep.subr.mxu0 0.0
        %781 = vmatpush1.msra.mxu0 0.0
        %782 = vmatprep.subr.mxu0 0.0
        %783 = vmatpush1.msra.mxu0 0.0
        %784 = vmatprep.subr.mxu0 0.0
        %785 = vmatpush1.msra.mxu0 0.0
        %786 = vmatprep.subr.mxu0 0.0
        %787 = vmatpush1.msra.mxu0 0.0
        %788 = vmatprep.subr.mxu0 0.0
        %789 = vmatpush1.msra.mxu0 0.0
        %790 = vmatprep.subr.mxu0 0.0
        %791 = vmatpush1.msra.mxu0 0.0
        %792 = vmatprep.subr.mxu0 0.0
        %793 = vmatpush1.msra.mxu0 0.0
        %794 = vmatprep.mubr.f32.mxu0 0.0
        %v795 = vand.u32 %v370, 4294901760
        %v796 = vsub.f32 %v370, %v795
        %797 = vmatmul.mubr.f32.gmra.mrb[0].mxu0 %v796
        %v798 = vpop.f32.mrb[0].mxu0
        %v799 = vadd.f32 %v659, %v798
        %v800 = vpop.f32.mrb[0].mxu0
        %v801 = vadd.f32 %v661, %v800
        %802 = vmatprep.mubr.f32.mxu0 0.0
        %v803 = vand.u32 %v373, 4294901760
        %v804 = vsub.f32 %v373, %v803
        %805 = vmatmul.mubr.f32.gmra.mrb[0].mxu0 %v804
        %v806 = vpop.f32.mrb[0].mxu0
        %v807 = vadd.f32 %v666, %v806
        %v808 = vpop.f32.mrb[0].mxu0
        %v809 = vadd.f32 %v668, %v808
        %810 = vmatprep.mubr.f32.mxu0 0.0
        %v811 = vand.u32 %v376, 4294901760
        %v812 = vsub.f32 %v376, %v811
        %813 = vmatmul.mubr.f32.gmra.mrb[0].mxu0 %v812
        %v814 = vpop.f32.mrb[0].mxu0
        %v815 = vadd.f32 %v673, %v814
        %v816 = vpop.f32.mrb[0].mxu0
        %v817 = vadd.f32 %v675, %v816
        %818 = vmatprep.mubr.f32.mxu0 0.0
        %v819 = vand.u32 %v379, 4294901760
        %v820 = vsub.f32 %v379, %v819
        %821 = vmatmul.mubr.f32.gmra.mrb[0].mxu0 %v820
        %v822 = vpop.f32.mrb[0].mxu0
        %v823 = vadd.f32 %v680, %v822
        %v824 = vpop.f32.mrb[0].mxu0
        %v825 = vadd.f32 %v682, %v824
        %826 = vmatprep.mubr.f32.mxu0 0.0
        %v827 = vand.u32 %v382, 4294901760
        %v828 = vsub.f32 %v382, %v827
        %829 = vmatmul.mubr.f32.gmra.mrb[0].mxu0 %v828
        %v830 = vpop.f32.mrb[0].mxu0
        %v831 = vadd.f32 %v687, %v830
        %v832 = vpop.f32.mrb[0].mxu0
        %v833 = vadd.f32 %v689, %v832
        %834 = vmatprep.mubr.f32.mxu0 0.0
        %v835 = vand.u32 %v385, 4294901760
        %v836 = vsub.f32 %v385, %v835
        %837 = vmatmul.mubr.f32.gmra.mrb[0].mxu0 %v836
        %v838 = vpop.f32.mrb[0].mxu0
        %v839 = vadd.f32 %v694, %v838
        %v840 = vpop.f32.mrb[0].mxu0
        %v841 = vadd.f32 %v696, %v840
        %842 = vmatprep.mubr.f32.mxu0 0.0
        %v843 = vand.u32 %v388, 4294901760
        %v844 = vsub.f32 %v388, %v843
        %845 = vmatmul.mubr.f32.gmra.mrb[0].mxu0 %v844
        %v846 = vpop.f32.mrb[0].mxu0
        %v847 = vadd.f32 %v701, %v846
        %v848 = vpop.f32.mrb[0].mxu0
        %v849 = vadd.f32 %v703, %v848
        %850 = vmatprep.mubr.f32.mxu0 0.0
        %v851 = vand.u32 %v391, 4294901760
        %v852 = vsub.f32 %v391, %v851
        %853 = vmatmul.mubr.f32.gmra.mrb[0].mxu0 %v852
        %v854 = vpop.f32.mrb[0].mxu0
        %v855 = vadd.f32 %v708, %v854
        %v856 = vpop.f32.mrb[0].mxu0
        %v857 = vadd.f32 %v710, %v856
        %858 = vmatprep.mubr.f32.mxu0 0.0
        %v859 = vand.u32 %v394, 4294901760
        %v860 = vsub.f32 %v394, %v859
        %861 = vmatmul.mubr.f32.gmra.mrb[0].mxu0 %v860
        %v862 = vpop.f32.mrb[0].mxu0
        %v863 = vadd.f32 %v715, %v862
        %v864 = vpop.f32.mrb[0].mxu0
        %v865 = vadd.f32 %v717, %v864
        %866 = vmatprep.mubr.f32.mxu0 0.0
        %v867 = vand.u32 %v397, 4294901760
        %v868 = vsub.f32 %v397, %v867
        %869 = vmatmul.mubr.f32.gmra.mrb[0].mxu0 %v868
        %v870 = vpop.f32.mrb[0].mxu0
        %v871 = vadd.f32 %v722, %v870
        %v872 = vpop.f32.mrb[0].mxu0
        %v873 = vadd.f32 %v724, %v872
        %874 = vdwg.mxu0
        %v875 = vand.u32 %v402, 4294901760
        %876 = vmatprep.subr.mxu0 %v875
        %v877 = vand.u32 %v400, 4294901760
        %878 = vmatpush1.msra.mxu0 %v877
        %879 = vmatprep.subr.mxu0 0.0
        %880 = vmatpush1.msra.mxu0 0.0
        %881 = vmatprep.subr.mxu0 0.0
        %882 = vmatpush1.msra.mxu0 0.0
        %883 = vmatprep.subr.mxu0 0.0
        %884 = vmatpush1.msra.mxu0 0.0
        %885 = vmatprep.subr.mxu0 0.0
        %886 = vmatpush1.msra.mxu0 0.0
        %887 = vmatprep.subr.mxu0 0.0
        %888 = vmatpush1.msra.mxu0 0.0
        %889 = vmatprep.subr.mxu0 0.0
        %890 = vmatpush1.msra.mxu0 0.0
        %891 = vmatprep.subr.mxu0 0.0
        %892 = vmatpush1.msra.mxu0 0.0
        %893 = vmatprep.subr.mxu0 0.0
        %894 = vmatpush1.msra.mxu0 0.0
        %895 = vmatprep.subr.mxu0 0.0
        %896 = vmatpush1.msra.mxu0 0.0
        %897 = vmatprep.subr.mxu0 0.0
        %898 = vmatpush1.msra.mxu0 0.0
        %899 = vmatprep.subr.mxu0 0.0
        %900 = vmatpush1.msra.mxu0 0.0
        %901 = vmatprep.subr.mxu0 0.0
        %902 = vmatpush1.msra.mxu0 0.0
        %903 = vmatprep.subr.mxu0 0.0
        %904 = vmatpush1.msra.mxu0 0.0
        %905 = vmatprep.subr.mxu0 0.0
        %906 = vmatpush1.msra.mxu0 0.0
        %907 = vmatprep.subr.mxu0 0.0
        %908 = vmatpush1.msra.mxu0 0.0
        %909 = vmatprep.subr.mxu0 0.0
        %910 = vmatpush1.msra.mxu0 0.0
        %911 = vmatprep.subr.mxu0 0.0
        %912 = vmatpush1.msra.mxu0 0.0
        %913 = vmatprep.subr.mxu0 0.0
        %914 = vmatpush1.msra.mxu0 0.0
        %915 = vmatprep.subr.mxu0 0.0
        %916 = vmatpush1.msra.mxu0 0.0
        %917 = vmatprep.subr.mxu0 0.0
        %918 = vmatpush1.msra.mxu0 0.0
        %919 = vmatprep.subr.mxu0 0.0
        %920 = vmatpush1.msra.mxu0 0.0
        %921 = vmatprep.subr.mxu0 0.0
        %922 = vmatpush1.msra.mxu0 0.0
        %923 = vmatprep.subr.mxu0 0.0
        %924 = vmatpush1.msra.mxu0 0.0
        %925 = vmatprep.subr.mxu0 0.0
        %926 = vmatpush1.msra.mxu0 0.0
        %927 = vmatprep.subr.mxu0 0.0
        %928 = vmatpush1.msra.mxu0 0.0
        %929 = vmatprep.subr.mxu0 0.0
        %930 = vmatpush1.msra.mxu0 0.0
        %931 = vmatprep.subr.mxu0 0.0
        %932 = vmatpush1.msra.mxu0 0.0
        %933 = vmatprep.subr.mxu0 0.0
        %934 = vmatpush1.msra.mxu0 0.0
        %935 = vmatprep.subr.mxu0 0.0
        %936 = vmatpush1.msra.mxu0 0.0
        %937 = vmatprep.subr.mxu0 0.0
        %938 = vmatpush1.msra.mxu0 0.0
        %939 = vmatprep.subr.mxu0 0.0
        %940 = vmatpush1.msra.mxu0 0.0
        %941 = vmatprep.mubr.f32.mxu0 0.0
        %v942 = vand.u32 %v370, 4294901760
        %v943 = vsub.f32 %v370, %v942
        %v944 = vand.u32 %v943, 4294901760
        %945 = vmatmul.mubr.f32.gmra.mrb[0].mxu0 %v944
        %v946 = vpop.f32.mrb[0].mxu0
        %v947 = vadd.f32 %v799, %v946
        %v948 = vpop.f32.mrb[0].mxu0
        %v949 = vadd.f32 %v801, %v948
        %950 = vmatprep.mubr.f32.mxu0 0.0
        %v951 = vand.u32 %v373, 4294901760
        %v952 = vsub.f32 %v373, %v951
        %v953 = vand.u32 %v952, 4294901760
        %954 = vmatmul.mubr.f32.gmra.mrb[0].mxu0 %v953
        %v955 = vpop.f32.mrb[0].mxu0
        %v956 = vadd.f32 %v807, %v955
        %v957 = vpop.f32.mrb[0].mxu0
        %v958 = vadd.f32 %v809, %v957
        %959 = vmatprep.mubr.f32.mxu0 0.0
        %v960 = vand.u32 %v376, 4294901760
        %v961 = vsub.f32 %v376, %v960
        %v962 = vand.u32 %v961, 4294901760
        %963 = vmatmul.mubr.f32.gmra.mrb[0].mxu0 %v962
        %v964 = vpop.f32.mrb[0].mxu0
        %v965 = vadd.f32 %v815, %v964
        %v966 = vpop.f32.mrb[0].mxu0
        %v967 = vadd.f32 %v817, %v966
        %968 = vmatprep.mubr.f32.mxu0 0.0
        %v969 = vand.u32 %v379, 4294901760
        %v970 = vsub.f32 %v379, %v969
        %v971 = vand.u32 %v970, 4294901760
        %972 = vmatmul.mubr.f32.gmra.mrb[0].mxu0 %v971
        %v973 = vpop.f32.mrb[0].mxu0
        %v974 = vadd.f32 %v823, %v973
        %v975 = vpop.f32.mrb[0].mxu0
        %v976 = vadd.f32 %v825, %v975
        %977 = vmatprep.mubr.f32.mxu0 0.0
        %v978 = vand.u32 %v382, 4294901760
        %v979 = vsub.f32 %v382, %v978
        %v980 = vand.u32 %v979, 4294901760
        %981 = vmatmul.mubr.f32.gmra.mrb[0].mxu0 %v980
        %v982 = vpop.f32.mrb[0].mxu0
        %v983 = vadd.f32 %v831, %v982
        %v984 = vpop.f32.mrb[0].mxu0
        %v985 = vadd.f32 %v833, %v984
        %986 = vmatprep.mubr.f32.mxu0 0.0
        %v987 = vand.u32 %v385, 4294901760
        %v988 = vsub.f32 %v385, %v987
        %v989 = vand.u32 %v988, 4294901760
        %990 = vmatmul.mubr.f32.gmra.mrb[0].mxu0 %v989
        %v991 = vpop.f32.mrb[0].mxu0
        %v992 = vadd.f32 %v839, %v991
        %v993 = vpop.f32.mrb[0].mxu0
        %v994 = vadd.f32 %v841, %v993
        %995 = vmatprep.mubr.f32.mxu0 0.0
        %v996 = vand.u32 %v388, 4294901760
        %v997 = vsub.f32 %v388, %v996
        %v998 = vand.u32 %v997, 4294901760
        %999 = vmatmul.mubr.f32.gmra.mrb[0].mxu0 %v998
        %v1000 = vpop.f32.mrb[0].mxu0
        %v1001 = vadd.f32 %v847, %v1000
        %v1002 = vpop.f32.mrb[0].mxu0
        %v1003 = vadd.f32 %v849, %v1002
        %1004 = vmatprep.mubr.f32.mxu0 0.0
        %v1005 = vand.u32 %v391, 4294901760
        %v1006 = vsub.f32 %v391, %v1005
        %v1007 = vand.u32 %v1006, 4294901760
        %1008 = vmatmul.mubr.f32.gmra.mrb[0].mxu0 %v1007
        %v1009 = vpop.f32.mrb[0].mxu0
        %v1010 = vadd.f32 %v855, %v1009
        %v1011 = vpop.f32.mrb[0].mxu0
        %v1012 = vadd.f32 %v857, %v1011
        %1013 = vmatprep.mubr.f32.mxu0 0.0
        %v1014 = vand.u32 %v394, 4294901760
        %v1015 = vsub.f32 %v394, %v1014
        %v1016 = vand.u32 %v1015, 4294901760
        %1017 = vmatmul.mubr.f32.gmra.mrb[0].mxu0 %v1016
        %v1018 = vpop.f32.mrb[0].mxu0
        %v1019 = vadd.f32 %v863, %v1018
        %v1020 = vpop.f32.mrb[0].mxu0
        %v1021 = vadd.f32 %v865, %v1020
        %1022 = vmatprep.mubr.f32.mxu0 0.0
        %v1023 = vand.u32 %v397, 4294901760
        %v1024 = vsub.f32 %v397, %v1023
        %v1025 = vand.u32 %v1024, 4294901760
        %1026 = vmatmul.mubr.f32.gmra.mrb[0].mxu0 %v1025
        %v1027 = vpop.f32.mrb[0].mxu0
        %v1028 = vadd.f32 %v871, %v1027
        %v1029 = vpop.f32.mrb[0].mxu0
        %v1030 = vadd.f32 %v873, %v1029
        %1031 = vdwg.mxu0
        %v1032 = vand.u32 %v402, 4294901760
        %v1033 = vsub.f32 %v402, %v1032
        %v1034 = vand.u32 %v1033, 4294901760
        %1035 = vmatprep.subr.mxu0 %v1034
        %v1036 = vand.u32 %v400, 4294901760
        %v1037 = vsub.f32 %v400, %v1036
        %v1038 = vand.u32 %v1037, 4294901760
        %1039 = vmatpush1.msra.mxu0 %v1038
        %1040 = vmatprep.subr.mxu0 0.0
        %1041 = vmatpush1.msra.mxu0 0.0
        %1042 = vmatprep.subr.mxu0 0.0
        %1043 = vmatpush1.msra.mxu0 0.0
        %1044 = vmatprep.subr.mxu0 0.0
        %1045 = vmatpush1.msra.mxu0 0.0
        %1046 = vmatprep.subr.mxu0 0.0
        %1047 = vmatpush1.msra.mxu0 0.0
        %1048 = vmatprep.subr.mxu0 0.0
        %1049 = vmatpush1.msra.mxu0 0.0
        %1050 = vmatprep.subr.mxu0 0.0
        %1051 = vmatpush1.msra.mxu0 0.0
        %1052 = vmatprep.subr.mxu0 0.0
        %1053 = vmatpush1.msra.mxu0 0.0
        %1054 = vmatprep.subr.mxu0 0.0
        %1055 = vmatpush1.msra.mxu0 0.0
        %1056 = vmatprep.subr.mxu0 0.0
        %1057 = vmatpush1.msra.mxu0 0.0
        %1058 = vmatprep.subr.mxu0 0.0
        %1059 = vmatpush1.msra.mxu0 0.0
        %1060 = vmatprep.subr.mxu0 0.0
        %1061 = vmatpush1.msra.mxu0 0.0
        %1062 = vmatprep.subr.mxu0 0.0
        %1063 = vmatpush1.msra.mxu0 0.0
        %1064 = vmatprep.subr.mxu0 0.0
        %1065 = vmatpush1.msra.mxu0 0.0
        %1066 = vmatprep.subr.mxu0 0.0
        %1067 = vmatpush1.msra.mxu0 0.0
        %1068 = vmatprep.subr.mxu0 0.0
        %1069 = vmatpush1.msra.mxu0 0.0
        %1070 = vmatprep.subr.mxu0 0.0
        %1071 = vmatpush1.msra.mxu0 0.0
        %1072 = vmatprep.subr.mxu0 0.0
        %1073 = vmatpush1.msra.mxu0 0.0
        %1074 = vmatprep.subr.mxu0 0.0
        %1075 = vmatpush1.msra.mxu0 0.0
        %1076 = vmatprep.subr.mxu0 0.0
        %1077 = vmatpush1.msra.mxu0 0.0
        %1078 = vmatprep.subr.mxu0 0.0
        %1079 = vmatpush1.msra.mxu0 0.0
        %1080 = vmatprep.subr.mxu0 0.0
        %1081 = vmatpush1.msra.mxu0 0.0
        %1082 = vmatprep.subr.mxu0 0.0
        %1083 = vmatpush1.msra.mxu0 0.0
        %1084 = vmatprep.subr.mxu0 0.0
        %1085 = vmatpush1.msra.mxu0 0.0
        %1086 = vmatprep.subr.mxu0 0.0
        %1087 = vmatpush1.msra.mxu0 0.0
        %1088 = vmatprep.subr.mxu0 0.0
        %1089 = vmatpush1.msra.mxu0 0.0
        %1090 = vmatprep.subr.mxu0 0.0
        %1091 = vmatpush1.msra.mxu0 0.0
        %1092 = vmatprep.subr.mxu0 0.0
        %1093 = vmatpush1.msra.mxu0 0.0
        %1094 = vmatprep.subr.mxu0 0.0
        %1095 = vmatpush1.msra.mxu0 0.0
        %1096 = vmatprep.subr.mxu0 0.0
        %1097 = vmatpush1.msra.mxu0 0.0
        %1098 = vmatprep.subr.mxu0 0.0
        %1099 = vmatpush1.msra.mxu0 0.0
        %1100 = vmatprep.subr.mxu0 0.0
        %1101 = vmatpush1.msra.mxu0 0.0
        %1102 = vmatprep.mubr.f32.mxu0 0.0
        %v1103 = vand.u32 %v370, 4294901760
        %1104 = vmatmul.mubr.f32.gmra.mrb[0].mxu0 %v1103
        %v1105 = vpop.f32.mrb[0].mxu0
        %v1106 = vadd.f32 %v947, %v1105
        %v1107 = vpop.f32.mrb[0].mxu0
        %v1108 = vadd.f32 %v949, %v1107
        %1109 = vmatprep.mubr.f32.mxu0 0.0
        %v1110 = vand.u32 %v373, 4294901760
        %1111 = vmatmul.mubr.f32.gmra.mrb[0].mxu0 %v1110
        %v1112 = vpop.f32.mrb[0].mxu0
        %v1113 = vadd.f32 %v956, %v1112
        %v1114 = vpop.f32.mrb[0].mxu0
        %v1115 = vadd.f32 %v958, %v1114
        %1116 = vmatprep.mubr.f32.mxu0 0.0
        %v1117 = vand.u32 %v376, 4294901760
        %1118 = vmatmul.mubr.f32.gmra.mrb[0].mxu0 %v1117
        %v1119 = vpop.f32.mrb[0].mxu0
        %v1120 = vadd.f32 %v965, %v1119
        %v1121 = vpop.f32.mrb[0].mxu0
        %v1122 = vadd.f32 %v967, %v1121
        %1123 = vmatprep.mubr.f32.mxu0 0.0
        %v1124 = vand.u32 %v379, 4294901760
        %1125 = vmatmul.mubr.f32.gmra.mrb[0].mxu0 %v1124
        %v1126 = vpop.f32.mrb[0].mxu0
        %v1127 = vadd.f32 %v974, %v1126
        %v1128 = vpop.f32.mrb[0].mxu0
        %v1129 = vadd.f32 %v976, %v1128
        %1130 = vmatprep.mubr.f32.mxu0 0.0
        %v1131 = vand.u32 %v382, 4294901760
        %1132 = vmatmul.mubr.f32.gmra.mrb[0].mxu0 %v1131
        %v1133 = vpop.f32.mrb[0].mxu0
        %v1134 = vadd.f32 %v983, %v1133
        %v1135 = vpop.f32.mrb[0].mxu0
        %v1136 = vadd.f32 %v985, %v1135
        %1137 = vmatprep.mubr.f32.mxu0 0.0
        %v1138 = vand.u32 %v385, 4294901760
        %1139 = vmatmul.mubr.f32.gmra.mrb[0].mxu0 %v1138
        %v1140 = vpop.f32.mrb[0].mxu0
        %v1141 = vadd.f32 %v992, %v1140
        %v1142 = vpop.f32.mrb[0].mxu0
        %v1143 = vadd.f32 %v994, %v1142
        %1144 = vmatprep.mubr.f32.mxu0 0.0
        %v1145 = vand.u32 %v388, 4294901760
        %1146 = vmatmul.mubr.f32.gmra.mrb[0].mxu0 %v1145
        %v1147 = vpop.f32.mrb[0].mxu0
        %v1148 = vadd.f32 %v1001, %v1147
        %v1149 = vpop.f32.mrb[0].mxu0
        %v1150 = vadd.f32 %v1003, %v1149
        %1151 = vmatprep.mubr.f32.mxu0 0.0
        %v1152 = vand.u32 %v391, 4294901760
        %1153 = vmatmul.mubr.f32.gmra.mrb[0].mxu0 %v1152
        %v1154 = vpop.f32.mrb[0].mxu0
        %v1155 = vadd.f32 %v1010, %v1154
        %v1156 = vpop.f32.mrb[0].mxu0
        %v1157 = vadd.f32 %v1012, %v1156
        %1158 = vmatprep.mubr.f32.mxu0 0.0
        %v1159 = vand.u32 %v394, 4294901760
        %1160 = vmatmul.mubr.f32.gmra.mrb[0].mxu0 %v1159
        %v1161 = vpop.f32.mrb[0].mxu0
        %v1162 = vadd.f32 %v1019, %v1161
        %v1163 = vpop.f32.mrb[0].mxu0
        %v1164 = vadd.f32 %v1021, %v1163
        %1165 = vmatprep.mubr.f32.mxu0 0.0
        %v1166 = vand.u32 %v397, 4294901760
        %1167 = vmatmul.mubr.f32.gmra.mrb[0].mxu0 %v1166
        %v1168 = vpop.f32.mrb[0].mxu0
        %v1169 = vadd.f32 %v1028, %v1168
        %v1170 = vpop.f32.mrb[0].mxu0
        %v1171 = vadd.f32 %v1030, %v1170
        %1172 = vdwg.mxu0
        %v1173 = vand.u32 %v402, 4294901760
        %1174 = vmatprep.subr.mxu0 %v1173
        %v1175 = vand.u32 %v400, 4294901760
        %1176 = vmatpush1.msra.mxu0 %v1175
        %1177 = vmatprep.subr.mxu0 0.0
        %1178 = vmatpush1.msra.mxu0 0.0
        %1179 = vmatprep.subr.mxu0 0.0
        %1180 = vmatpush1.msra.mxu0 0.0
        %1181 = vmatprep.subr.mxu0 0.0
        %1182 = vmatpush1.msra.mxu0 0.0
        %1183 = vmatprep.subr.mxu0 0.0
        %1184 = vmatpush1.msra.mxu0 0.0
        %1185 = vmatprep.subr.mxu0 0.0
        %1186 = vmatpush1.msra.mxu0 0.0
        %1187 = vmatprep.subr.mxu0 0.0
        %1188 = vmatpush1.msra.mxu0 0.0
        %1189 = vmatprep.subr.mxu0 0.0
        %1190 = vmatpush1.msra.mxu0 0.0
        %1191 = vmatprep.subr.mxu0 0.0
        %1192 = vmatpush1.msra.mxu0 0.0
        %1193 = vmatprep.subr.mxu0 0.0
        %1194 = vmatpush1.msra.mxu0 0.0
        %1195 = vmatprep.subr.mxu0 0.0
        %1196 = vmatpush1.msra.mxu0 0.0
        %1197 = vmatprep.subr.mxu0 0.0
        %1198 = vmatpush1.msra.mxu0 0.0
        %1199 = vmatprep.subr.mxu0 0.0
        %1200 = vmatpush1.msra.mxu0 0.0
        %1201 = vmatprep.subr.mxu0 0.0
        %1202 = vmatpush1.msra.mxu0 0.0
        %1203 = vmatprep.subr.mxu0 0.0
        %1204 = vmatpush1.msra.mxu0 0.0
        %1205 = vmatprep.subr.mxu0 0.0
        %1206 = vmatpush1.msra.mxu0 0.0
        %1207 = vmatprep.subr.mxu0 0.0
        %1208 = vmatpush1.msra.mxu0 0.0
        %1209 = vmatprep.subr.mxu0 0.0
        %1210 = vmatpush1.msra.mxu0 0.0
        %1211 = vmatprep.subr.mxu0 0.0
        %1212 = vmatpush1.msra.mxu0 0.0
        %1213 = vmatprep.subr.mxu0 0.0
        %1214 = vmatpush1.msra.mxu0 0.0
        %1215 = vmatprep.subr.mxu0 0.0
        %1216 = vmatpush1.msra.mxu0 0.0
        %1217 = vmatprep.subr.mxu0 0.0
        %1218 = vmatpush1.msra.mxu0 0.0
        %1219 = vmatprep.subr.mxu0 0.0
        %1220 = vmatpush1.msra.mxu0 0.0
        %1221 = vmatprep.subr.mxu0 0.0
        %1222 = vmatpush1.msra.mxu0 0.0
        %1223 = vmatprep.subr.mxu0 0.0
        %1224 = vmatpush1.msra.mxu0 0.0
        %1225 = vmatprep.subr.mxu0 0.0
        %1226 = vmatpush1.msra.mxu0 0.0
        %1227 = vmatprep.subr.mxu0 0.0
        %1228 = vmatpush1.msra.mxu0 0.0
        %1229 = vmatprep.subr.mxu0 0.0
        %1230 = vmatpush1.msra.mxu0 0.0
        %1231 = vmatprep.subr.mxu0 0.0
        %1232 = vmatpush1.msra.mxu0 0.0
        %1233 = vmatprep.subr.mxu0 0.0
        %1234 = vmatpush1.msra.mxu0 0.0
        %1235 = vmatprep.subr.mxu0 0.0
        %1236 = vmatpush1.msra.mxu0 0.0
        %1237 = vmatprep.subr.mxu0 0.0
        %1238 = vmatpush1.msra.mxu0 0.0
        %1239 = vmatprep.mubr.f32.mxu0 0.0
        %v1240 = vand.u32 %v370, 4294901760
        %1241 = vmatmul.mubr.f32.gmra.mrb[0].mxu0 %v1240
        %v1242 = vpop.f32.mrb[0].mxu0
        %v1243 = vadd.f32 %v1106, %v1242
        %v1244 = vpop.f32.mrb[0].mxu0
        %v1245 = vadd.f32 %v1108, %v1244
        %1246 = vmatprep.mubr.f32.mxu0 0.0
        %v1247 = vand.u32 %v373, 4294901760
        %1248 = vmatmul.mubr.f32.gmra.mrb[0].mxu0 %v1247
        %v1249 = vpop.f32.mrb[0].mxu0
        %v1250 = vadd.f32 %v1113, %v1249
        %v1251 = vpop.f32.mrb[0].mxu0
        %v1252 = vadd.f32 %v1115, %v1251
        %1253 = vmatprep.mubr.f32.mxu0 0.0
        %v1254 = vand.u32 %v376, 4294901760
        %1255 = vmatmul.mubr.f32.gmra.mrb[0].mxu0 %v1254
        %v1256 = vpop.f32.mrb[0].mxu0
        %v1257 = vadd.f32 %v1120, %v1256
        %v1258 = vpop.f32.mrb[0].mxu0
        %v1259 = vadd.f32 %v1122, %v1258
        %1260 = vmatprep.mubr.f32.mxu0 0.0
        %v1261 = vand.u32 %v379, 4294901760
        %1262 = vmatmul.mubr.f32.gmra.mrb[0].mxu0 %v1261
        %v1263 = vpop.f32.mrb[0].mxu0
        %v1264 = vadd.f32 %v1127, %v1263
        %v1265 = vpop.f32.mrb[0].mxu0
        %v1266 = vadd.f32 %v1129, %v1265
        %1267 = vmatprep.mubr.f32.mxu0 0.0
        %v1268 = vand.u32 %v382, 4294901760
        %1269 = vmatmul.mubr.f32.gmra.mrb[0].mxu0 %v1268
        %v1270 = vpop.f32.mrb[0].mxu0
        %v1271 = vadd.f32 %v1134, %v1270
        %v1272 = vpop.f32.mrb[0].mxu0
        %v1273 = vadd.f32 %v1136, %v1272
        %1274 = vmatprep.mubr.f32.mxu0 0.0
        %v1275 = vand.u32 %v385, 4294901760
        %1276 = vmatmul.mubr.f32.gmra.mrb[0].mxu0 %v1275
        %v1277 = vpop.f32.mrb[0].mxu0
        %v1278 = vadd.f32 %v1141, %v1277
        %v1279 = vpop.f32.mrb[0].mxu0
        %v1280 = vadd.f32 %v1143, %v1279
        %1281 = vmatprep.mubr.f32.mxu0 0.0
        %v1282 = vand.u32 %v388, 4294901760
        %1283 = vmatmul.mubr.f32.gmra.mrb[0].mxu0 %v1282
        %v1284 = vpop.f32.mrb[0].mxu0
        %v1285 = vadd.f32 %v1148, %v1284
        %v1286 = vpop.f32.mrb[0].mxu0
        %v1287 = vadd.f32 %v1150, %v1286
        %1288 = vmatprep.mubr.f32.mxu0 0.0
        %v1289 = vand.u32 %v391, 4294901760
        %1290 = vmatmul.mubr.f32.gmra.mrb[0].mxu0 %v1289
        %v1291 = vpop.f32.mrb[0].mxu0
        %v1292 = vadd.f32 %v1155, %v1291
        %v1293 = vpop.f32.mrb[0].mxu0
        %v1294 = vadd.f32 %v1157, %v1293
        %1295 = vmatprep.mubr.f32.mxu0 0.0
        %v1296 = vand.u32 %v394, 4294901760
        %1297 = vmatmul.mubr.f32.gmra.mrb[0].mxu0 %v1296
        %v1298 = vpop.f32.mrb[0].mxu0
        %v1299 = vadd.f32 %v1162, %v1298
        %v1300 = vpop.f32.mrb[0].mxu0
        %v1301 = vadd.f32 %v1164, %v1300
        %1302 = vmatprep.mubr.f32.mxu0 0.0
        %v1303 = vand.u32 %v397, 4294901760
        %1304 = vmatmul.mubr.f32.gmra.mrb[0].mxu0 %v1303
        %v1305 = vpop.f32.mrb[0].mxu0
        %v1306 = vadd.f32 %v1169, %v1305
        %v1307 = vpop.f32.mrb[0].mxu0
        %v1308 = vadd.f32 %v1171, %v1307
        %1309 = vdwg.mxu0
        %1310 = vst [vmem:[%s275] sm:$0xff] %v1243
        %1311 = vst [vmem:[%s275 + $0x8] sm:$0xff] %v1245
        %1312 = vst [vmem:[%s275 + $0x10] sm:$0xff] %v1250
        %1313 = vst [vmem:[%s275 + $0x18] sm:$0xff] %v1252
        %1314 = vst [vmem:[%s275 + $0x20] sm:$0xff] %v1257
        %1315 = vst [vmem:[%s275 + $0x28] sm:$0xff] %v1259
        %1316 = vst [vmem:[%s275 + $0x30] sm:$0xff] %v1264
        %1317 = vst [vmem:[%s275 + $0x38] sm:$0xff] %v1266
        %1318 = vst [vmem:[%s275 + $0x40] sm:$0xff] %v1271
        %1319 = vst [vmem:[%s275 + $0x48] sm:$0xff] %v1273
        %1320 = vst [vmem:[%s275 + $0x50] sm:$0xff] %v1278
        %1321 = vst [vmem:[%s275 + $0x58] sm:$0xff] %v1280
        %1322 = vst [vmem:[%s275 + $0x60] sm:$0xff] %v1285
        %1323 = vst [vmem:[%s275 + $0x68] sm:$0xff] %v1287
        %1324 = vst [vmem:[%s275 + $0x70] sm:$0xff] %v1292
        %1325 = vst [vmem:[%s275 + $0x78] sm:$0xff] %v1294
        %1326 = vst [vmem:[%s275 + $0x80] sm:$0xff] %v1299
        %1327 = vst [vmem:[%s275 + $0x88] sm:$0xff] %v1301
        %1328 = vst [vmem:[%s275 + $0x90] sm:$0xff] %v1306
        %1329 = vst [vmem:[%s275 + $0x98] sm:$0xff] %v1308
        %v1330 = vld [vmem:[%s3] sm:$0xff]
        %v1331 = vld [vmem:[%s3 + $0x8] sm:$0xff]
        %v1332 = vld [vmem:[%s3 + $0x10] sm:$0xff]
        %v1333 = vld [vmem:[%s3 + $0x18] sm:$0xff]
        %v1334 = vld [vmem:[%s3 + $0x20] sm:$0xff]
        %v1335 = vld [vmem:[%s3 + $0x28] sm:$0xff]
        %v1336 = vld [vmem:[%s3 + $0x30] sm:$0xff]
        %v1337 = vld [vmem:[%s3 + $0x38] sm:$0xff]
        %v1338 = vld [vmem:[%s4] sm:$0xff]
        %v1339 = vld [vmem:[%s4 + $0x8] sm:$0xff]
        %v1340 = vld [vmem:[%s4 + $0x10] sm:$0xff]
        %v1341 = vld [vmem:[%s4 + $0x18] sm:$0xff]
        %v1342 = vld [vmem:[%s4 + $0x20] sm:$0xff]
        %v1343 = vld [vmem:[%s4 + $0x28] sm:$0xff]
        %v1344 = vld [vmem:[%s4 + $0x30] sm:$0xff]
        %v1345 = vld [vmem:[%s4 + $0x38] sm:$0xff]
        %1347 = vset.pattern.permute.xlu0 0
        %1348 = vperm.xlu0 %1347, %v1338
        %v1349 = vpop.permute.xlu0 %1348
        %1352 = vset.pattern.permute.xlu0 0
        %1353 = vperm.xlu0 %1352, %v1339
        %v1354 = vpop.permute.xlu0 %1353
        %1357 = vset.pattern.permute.xlu0 0
        %1358 = vperm.xlu0 %1357, %v1340
        %v1359 = vpop.permute.xlu0 %1358
        %1362 = vset.pattern.permute.xlu0 0
        %1363 = vperm.xlu0 %1362, %v1341
        %v1364 = vpop.permute.xlu0 %1363
        %1367 = vset.pattern.permute.xlu0 0
        %1368 = vperm.xlu0 %1367, %v1342
        %v1369 = vpop.permute.xlu0 %1368
        %1372 = vset.pattern.permute.xlu0 0
        %1373 = vperm.xlu0 %1372, %v1343
        %v1374 = vpop.permute.xlu0 %1373
        %1377 = vset.pattern.permute.xlu0 0
        %1378 = vperm.xlu0 %1377, %v1344
        %v1379 = vpop.permute.xlu0 %1378
        %1382 = vset.pattern.permute.xlu0 0
        %1383 = vperm.xlu0 %1382, %v1345
        %v1384 = vpop.permute.xlu0 %1383
        %v1387 = vsel %vm368, %v1330, 0
        %v1390 = vsel %vm368, %v1331, 0
        %v1393 = vsel %vm368, %v1332, 0
        %v1396 = vsel %vm368, %v1333, 0
        %v1399 = vsel %vm368, %v1334, 0
        %v1402 = vsel %vm368, %v1335, 0
        %v1405 = vsel %vm368, %v1336, 0
        %v1408 = vsel %vm368, %v1337, 0
        %v1410 = vand.u32 %v402, 4294901760
        %1411 = vmatprep.subr.mxu0 %v1410
        %v1412 = vand.u32 %v400, 4294901760
        %1413 = vmatpush1.msra.mxu0 %v1412
        %1414 = vmatprep.subr.mxu0 0.0
        %1415 = vmatpush1.msra.mxu0 0.0
        %1416 = vmatprep.subr.mxu0 0.0
        %1417 = vmatpush1.msra.mxu0 0.0
        %1418 = vmatprep.subr.mxu0 0.0
        %1419 = vmatpush1.msra.mxu0 0.0
        %1420 = vmatprep.subr.mxu0 0.0
        %1421 = vmatpush1.msra.mxu0 0.0
        %1422 = vmatprep.subr.mxu0 0.0
        %1423 = vmatpush1.msra.mxu0 0.0
        %1424 = vmatprep.subr.mxu0 0.0
        %1425 = vmatpush1.msra.mxu0 0.0
        %1426 = vmatprep.subr.mxu0 0.0
        %1427 = vmatpush1.msra.mxu0 0.0
        %1428 = vmatprep.subr.mxu0 0.0
        %1429 = vmatpush1.msra.mxu0 0.0
        %1430 = vmatprep.subr.mxu0 0.0
        %1431 = vmatpush1.msra.mxu0 0.0
        %1432 = vmatprep.subr.mxu0 0.0
        %1433 = vmatpush1.msra.mxu0 0.0
        %1434 = vmatprep.subr.mxu0 0.0
        %1435 = vmatpush1.msra.mxu0 0.0
        %1436 = vmatprep.subr.mxu0 0.0
        %1437 = vmatpush1.msra.mxu0 0.0
        %1438 = vmatprep.subr.mxu0 0.0
        %1439 = vmatpush1.msra.mxu0 0.0
        %1440 = vmatprep.subr.mxu0 0.0
        %1441 = vmatpush1.msra.mxu0 0.0
        %1442 = vmatprep.subr.mxu0 0.0
        %1443 = vmatpush1.msra.mxu0 0.0
        %1444 = vmatprep.subr.mxu0 0.0
        %1445 = vmatpush1.msra.mxu0 0.0
        %1446 = vmatprep.subr.mxu0 0.0
        %1447 = vmatpush1.msra.mxu0 0.0
        %1448 = vmatprep.subr.mxu0 0.0
        %1449 = vmatpush1.msra.mxu0 0.0
        %1450 = vmatprep.subr.mxu0 0.0
        %1451 = vmatpush1.msra.mxu0 0.0
        %1452 = vmatprep.subr.mxu0 0.0
        %1453 = vmatpush1.msra.mxu0 0.0
        %1454 = vmatprep.subr.mxu0 0.0
        %1455 = vmatpush1.msra.mxu0 0.0
        %1456 = vmatprep.subr.mxu0 0.0
        %1457 = vmatpush1.msra.mxu0 0.0
        %1458 = vmatprep.subr.mxu0 0.0
        %1459 = vmatpush1.msra.mxu0 0.0
        %1460 = vmatprep.subr.mxu0 0.0
        %1461 = vmatpush1.msra.mxu0 0.0
        %1462 = vmatprep.subr.mxu0 0.0
        %1463 = vmatpush1.msra.mxu0 0.0
        %1464 = vmatprep.subr.mxu0 0.0
        %1465 = vmatpush1.msra.mxu0 0.0
        %1466 = vmatprep.subr.mxu0 0.0
        %1467 = vmatpush1.msra.mxu0 0.0
        %1468 = vmatprep.subr.mxu0 0.0
        %1469 = vmatpush1.msra.mxu0 0.0
        %1470 = vmatprep.subr.mxu0 0.0
        %1471 = vmatpush1.msra.mxu0 0.0
        %1472 = vmatprep.subr.mxu0 0.0
        %1473 = vmatpush1.msra.mxu0 0.0
        %1474 = vmatprep.subr.mxu0 0.0
        %1475 = vmatpush1.msra.mxu0 0.0
        %1476 = vmatprep.mubr.f32.mxu0 0.0
        %v1477 = vand.u32 %v1387, 4294901760
        %v1478 = vsub.f32 %v1387, %v1477
        %v1479 = vand.u32 %v1478, 4294901760
        %v1480 = vsub.f32 %v1478, %v1479
        %v1481 = vand.u32 %v1480, 4294901760
        %1482 = vmatmul.mubr.f32.gmra.mrb[0].mxu0 %v1481
        %v1483 = vpop.f32.mrb[0].mxu0
        %v1484 = vadd.f32 %v1349, %v1483
        %v1485 = vpop.f32.mrb[0].mxu0
        %v1486 = vadd.f32 %v1349, %v1485
        %1487 = vmatprep.mubr.f32.mxu0 0.0
        %v1488 = vand.u32 %v1390, 4294901760
        %v1489 = vsub.f32 %v1390, %v1488
        %v1490 = vand.u32 %v1489, 4294901760
        %v1491 = vsub.f32 %v1489, %v1490
        %v1492 = vand.u32 %v1491, 4294901760
        %1493 = vmatmul.mubr.f32.gmra.mrb[0].mxu0 %v1492
        %v1494 = vpop.f32.mrb[0].mxu0
        %v1495 = vadd.f32 %v1354, %v1494
        %v1496 = vpop.f32.mrb[0].mxu0
        %v1497 = vadd.f32 %v1354, %v1496
        %1498 = vmatprep.mubr.f32.mxu0 0.0
        %v1499 = vand.u32 %v1393, 4294901760
        %v1500 = vsub.f32 %v1393, %v1499
        %v1501 = vand.u32 %v1500, 4294901760
        %v1502 = vsub.f32 %v1500, %v1501
        %v1503 = vand.u32 %v1502, 4294901760
        %1504 = vmatmul.mubr.f32.gmra.mrb[0].mxu0 %v1503
        %v1505 = vpop.f32.mrb[0].mxu0
        %v1506 = vadd.f32 %v1359, %v1505
        %v1507 = vpop.f32.mrb[0].mxu0
        %v1508 = vadd.f32 %v1359, %v1507
        %1509 = vmatprep.mubr.f32.mxu0 0.0
        %v1510 = vand.u32 %v1396, 4294901760
        %v1511 = vsub.f32 %v1396, %v1510
        %v1512 = vand.u32 %v1511, 4294901760
        %v1513 = vsub.f32 %v1511, %v1512
        %v1514 = vand.u32 %v1513, 4294901760
        %1515 = vmatmul.mubr.f32.gmra.mrb[0].mxu0 %v1514
        %v1516 = vpop.f32.mrb[0].mxu0
        %v1517 = vadd.f32 %v1364, %v1516
        %v1518 = vpop.f32.mrb[0].mxu0
        %v1519 = vadd.f32 %v1364, %v1518
        %1520 = vmatprep.mubr.f32.mxu0 0.0
        %v1521 = vand.u32 %v1399, 4294901760
        %v1522 = vsub.f32 %v1399, %v1521
        %v1523 = vand.u32 %v1522, 4294901760
        %v1524 = vsub.f32 %v1522, %v1523
        %v1525 = vand.u32 %v1524, 4294901760
        %1526 = vmatmul.mubr.f32.gmra.mrb[0].mxu0 %v1525
        %v1527 = vpop.f32.mrb[0].mxu0
        %v1528 = vadd.f32 %v1369, %v1527
        %v1529 = vpop.f32.mrb[0].mxu0
        %v1530 = vadd.f32 %v1369, %v1529
        %1531 = vmatprep.mubr.f32.mxu0 0.0
        %v1532 = vand.u32 %v1402, 4294901760
        %v1533 = vsub.f32 %v1402, %v1532
        %v1534 = vand.u32 %v1533, 4294901760
        %v1535 = vsub.f32 %v1533, %v1534
        %v1536 = vand.u32 %v1535, 4294901760
        %1537 = vmatmul.mubr.f32.gmra.mrb[0].mxu0 %v1536
        %v1538 = vpop.f32.mrb[0].mxu0
        %v1539 = vadd.f32 %v1374, %v1538
        %v1540 = vpop.f32.mrb[0].mxu0
        %v1541 = vadd.f32 %v1374, %v1540
        %1542 = vmatprep.mubr.f32.mxu0 0.0
        %v1543 = vand.u32 %v1405, 4294901760
        %v1544 = vsub.f32 %v1405, %v1543
        %v1545 = vand.u32 %v1544, 4294901760
        %v1546 = vsub.f32 %v1544, %v1545
        %v1547 = vand.u32 %v1546, 4294901760
        %1548 = vmatmul.mubr.f32.gmra.mrb[0].mxu0 %v1547
        %v1549 = vpop.f32.mrb[0].mxu0
        %v1550 = vadd.f32 %v1379, %v1549
        %v1551 = vpop.f32.mrb[0].mxu0
        %v1552 = vadd.f32 %v1379, %v1551
        %1553 = vmatprep.mubr.f32.mxu0 0.0
        %v1554 = vand.u32 %v1408, 4294901760
        %v1555 = vsub.f32 %v1408, %v1554
        %v1556 = vand.u32 %v1555, 4294901760
        %v1557 = vsub.f32 %v1555, %v1556
        %v1558 = vand.u32 %v1557, 4294901760
        %1559 = vmatmul.mubr.f32.gmra.mrb[0].mxu0 %v1558
        %v1560 = vpop.f32.mrb[0].mxu0
        %v1561 = vadd.f32 %v1384, %v1560
        %v1562 = vpop.f32.mrb[0].mxu0
        %v1563 = vadd.f32 %v1384, %v1562
        %1564 = vdwg.mxu0
        %v1565 = vand.u32 %v402, 4294901760
        %v1566 = vsub.f32 %v402, %v1565
        %v1567 = vand.u32 %v1566, 4294901760
        %v1568 = vsub.f32 %v1566, %v1567
        %v1569 = vand.u32 %v1568, 4294901760
        %1570 = vmatprep.subr.mxu0 %v1569
        %v1571 = vand.u32 %v400, 4294901760
        %v1572 = vsub.f32 %v400, %v1571
        %v1573 = vand.u32 %v1572, 4294901760
        %v1574 = vsub.f32 %v1572, %v1573
        %v1575 = vand.u32 %v1574, 4294901760
        %1576 = vmatpush1.msra.mxu0 %v1575
        %1577 = vmatprep.subr.mxu0 0.0
        %1578 = vmatpush1.msra.mxu0 0.0
        %1579 = vmatprep.subr.mxu0 0.0
        %1580 = vmatpush1.msra.mxu0 0.0
        %1581 = vmatprep.subr.mxu0 0.0
        %1582 = vmatpush1.msra.mxu0 0.0
        %1583 = vmatprep.subr.mxu0 0.0
        %1584 = vmatpush1.msra.mxu0 0.0
        %1585 = vmatprep.subr.mxu0 0.0
        %1586 = vmatpush1.msra.mxu0 0.0
        %1587 = vmatprep.subr.mxu0 0.0
        %1588 = vmatpush1.msra.mxu0 0.0
        %1589 = vmatprep.subr.mxu0 0.0
        %1590 = vmatpush1.msra.mxu0 0.0
        %1591 = vmatprep.subr.mxu0 0.0
        %1592 = vmatpush1.msra.mxu0 0.0
        %1593 = vmatprep.subr.mxu0 0.0
        %1594 = vmatpush1.msra.mxu0 0.0
        %1595 = vmatprep.subr.mxu0 0.0
        %1596 = vmatpush1.msra.mxu0 0.0
        %1597 = vmatprep.subr.mxu0 0.0
        %1598 = vmatpush1.msra.mxu0 0.0
        %1599 = vmatprep.subr.mxu0 0.0
        %1600 = vmatpush1.msra.mxu0 0.0
        %1601 = vmatprep.subr.mxu0 0.0
        %1602 = vmatpush1.msra.mxu0 0.0
        %1603 = vmatprep.subr.mxu0 0.0
        %1604 = vmatpush1.msra.mxu0 0.0
        %1605 = vmatprep.subr.mxu0 0.0
        %1606 = vmatpush1.msra.mxu0 0.0
        %1607 = vmatprep.subr.mxu0 0.0
        %1608 = vmatpush1.msra.mxu0 0.0
        %1609 = vmatprep.subr.mxu0 0.0
        %1610 = vmatpush1.msra.mxu0 0.0
        %1611 = vmatprep.subr.mxu0 0.0
        %1612 = vmatpush1.msra.mxu0 0.0
        %1613 = vmatprep.subr.mxu0 0.0
        %1614 = vmatpush1.msra.mxu0 0.0
        %1615 = vmatprep.subr.mxu0 0.0
        %1616 = vmatpush1.msra.mxu0 0.0
        %1617 = vmatprep.subr.mxu0 0.0
        %1618 = vmatpush1.msra.mxu0 0.0
        %1619 = vmatprep.subr.mxu0 0.0
        %1620 = vmatpush1.msra.mxu0 0.0
        %1621 = vmatprep.subr.mxu0 0.0
        %1622 = vmatpush1.msra.mxu0 0.0
        %1623 = vmatprep.subr.mxu0 0.0
        %1624 = vmatpush1.msra.mxu0 0.0
        %1625 = vmatprep.subr.mxu0 0.0
        %1626 = vmatpush1.msra.mxu0 0.0
        %1627 = vmatprep.subr.mxu0 0.0
        %1628 = vmatpush1.msra.mxu0 0.0
        %1629 = vmatprep.subr.mxu0 0.0
        %1630 = vmatpush1.msra.mxu0 0.0
        %1631 = vmatprep.subr.mxu0 0.0
        %1632 = vmatpush1.msra.mxu0 0.0
        %1633 = vmatprep.subr.mxu0 0.0
        %1634 = vmatpush1.msra.mxu0 0.0
        %1635 = vmatprep.subr.mxu0 0.0
        %1636 = vmatpush1.msra.mxu0 0.0
        %1637 = vmatprep.subr.mxu0 0.0
        %1638 = vmatpush1.msra.mxu0 0.0
        %1639 = vmatprep.mubr.f32.mxu0 0.0
        %v1640 = vand.u32 %v1387, 4294901760
        %1641 = vmatmul.mubr.f32.gmra.mrb[0].mxu0 %v1640
        %v1642 = vpop.f32.mrb[0].mxu0
        %v1643 = vadd.f32 %v1484, %v1642
        %v1644 = vpop.f32.mrb[0].mxu0
        %v1645 = vadd.f32 %v1486, %v1644
        %1646 = vmatprep.mubr.f32.mxu0 0.0
        %v1647 = vand.u32 %v1390, 4294901760
        %1648 = vmatmul.mubr.f32.gmra.mrb[0].mxu0 %v1647
        %v1649 = vpop.f32.mrb[0].mxu0
        %v1650 = vadd.f32 %v1495, %v1649
        %v1651 = vpop.f32.mrb[0].mxu0
        %v1652 = vadd.f32 %v1497, %v1651
        %1653 = vmatprep.mubr.f32.mxu0 0.0
        %v1654 = vand.u32 %v1393, 4294901760
        %1655 = vmatmul.mubr.f32.gmra.mrb[0].mxu0 %v1654
        %v1656 = vpop.f32.mrb[0].mxu0
        %v1657 = vadd.f32 %v1506, %v1656
        %v1658 = vpop.f32.mrb[0].mxu0
        %v1659 = vadd.f32 %v1508, %v1658
        %1660 = vmatprep.mubr.f32.mxu0 0.0
        %v1661 = vand.u32 %v1396, 4294901760
        %1662 = vmatmul.mubr.f32.gmra.mrb[0].mxu0 %v1661
        %v1663 = vpop.f32.mrb[0].mxu0
        %v1664 = vadd.f32 %v1517, %v1663
        %v1665 = vpop.f32.mrb[0].mxu0
        %v1666 = vadd.f32 %v1519, %v1665
        %1667 = vmatprep.mubr.f32.mxu0 0.0
        %v1668 = vand.u32 %v1399, 4294901760
        %1669 = vmatmul.mubr.f32.gmra.mrb[0].mxu0 %v1668
        %v1670 = vpop.f32.mrb[0].mxu0
        %v1671 = vadd.f32 %v1528, %v1670
        %v1672 = vpop.f32.mrb[0].mxu0
        %v1673 = vadd.f32 %v1530, %v1672
        %1674 = vmatprep.mubr.f32.mxu0 0.0
        %v1675 = vand.u32 %v1402, 4294901760
        %1676 = vmatmul.mubr.f32.gmra.mrb[0].mxu0 %v1675
        %v1677 = vpop.f32.mrb[0].mxu0
        %v1678 = vadd.f32 %v1539, %v1677
        %v1679 = vpop.f32.mrb[0].mxu0
        %v1680 = vadd.f32 %v1541, %v1679
        %1681 = vmatprep.mubr.f32.mxu0 0.0
        %v1682 = vand.u32 %v1405, 4294901760
        %1683 = vmatmul.mubr.f32.gmra.mrb[0].mxu0 %v1682
        %v1684 = vpop.f32.mrb[0].mxu0
        %v1685 = vadd.f32 %v1550, %v1684
        %v1686 = vpop.f32.mrb[0].mxu0
        %v1687 = vadd.f32 %v1552, %v1686
        %1688 = vmatprep.mubr.f32.mxu0 0.0
        %v1689 = vand.u32 %v1408, 4294901760
        %1690 = vmatmul.mubr.f32.gmra.mrb[0].mxu0 %v1689
        %v1691 = vpop.f32.mrb[0].mxu0
        %v1692 = vadd.f32 %v1561, %v1691
        %v1693 = vpop.f32.mrb[0].mxu0
        %v1694 = vadd.f32 %v1563, %v1693
        %1695 = vdwg.mxu0
        %v1696 = vand.u32 %v402, 4294901760
        %v1697 = vsub.f32 %v402, %v1696
        %1698 = vmatprep.subr.mxu0 %v1697
        %v1699 = vand.u32 %v400, 4294901760
        %v1700 = vsub.f32 %v400, %v1699
        %1701 = vmatpush1.msra.mxu0 %v1700
        %1702 = vmatprep.subr.mxu0 0.0
        %1703 = vmatpush1.msra.mxu0 0.0
        %1704 = vmatprep.subr.mxu0 0.0
        %1705 = vmatpush1.msra.mxu0 0.0
        %1706 = vmatprep.subr.mxu0 0.0
        %1707 = vmatpush1.msra.mxu0 0.0
        %1708 = vmatprep.subr.mxu0 0.0
        %1709 = vmatpush1.msra.mxu0 0.0
        %1710 = vmatprep.subr.mxu0 0.0
        %1711 = vmatpush1.msra.mxu0 0.0
        %1712 = vmatprep.subr.mxu0 0.0
        %1713 = vmatpush1.msra.mxu0 0.0
        %1714 = vmatprep.subr.mxu0 0.0
        %1715 = vmatpush1.msra.mxu0 0.0
        %1716 = vmatprep.subr.mxu0 0.0
        %1717 = vmatpush1.msra.mxu0 0.0
        %1718 = vmatprep.subr.mxu0 0.0
        %1719 = vmatpush1.msra.mxu0 0.0
        %1720 = vmatprep.subr.mxu0 0.0
        %1721 = vmatpush1.msra.mxu0 0.0
        %1722 = vmatprep.subr.mxu0 0.0
        %1723 = vmatpush1.msra.mxu0 0.0
        %1724 = vmatprep.subr.mxu0 0.0
        %1725 = vmatpush1.msra.mxu0 0.0
        %1726 = vmatprep.subr.mxu0 0.0
        %1727 = vmatpush1.msra.mxu0 0.0
        %1728 = vmatprep.subr.mxu0 0.0
        %1729 = vmatpush1.msra.mxu0 0.0
        %1730 = vmatprep.subr.mxu0 0.0
        %1731 = vmatpush1.msra.mxu0 0.0
        %1732 = vmatprep.subr.mxu0 0.0
        %1733 = vmatpush1.msra.mxu0 0.0
        %1734 = vmatprep.subr.mxu0 0.0
        %1735 = vmatpush1.msra.mxu0 0.0
        %1736 = vmatprep.subr.mxu0 0.0
        %1737 = vmatpush1.msra.mxu0 0.0
        %1738 = vmatprep.subr.mxu0 0.0
        %1739 = vmatpush1.msra.mxu0 0.0
        %1740 = vmatprep.subr.mxu0 0.0
        %1741 = vmatpush1.msra.mxu0 0.0
        %1742 = vmatprep.subr.mxu0 0.0
        %1743 = vmatpush1.msra.mxu0 0.0
        %1744 = vmatprep.subr.mxu0 0.0
        %1745 = vmatpush1.msra.mxu0 0.0
        %1746 = vmatprep.subr.mxu0 0.0
        %1747 = vmatpush1.msra.mxu0 0.0
        %1748 = vmatprep.subr.mxu0 0.0
        %1749 = vmatpush1.msra.mxu0 0.0
        %1750 = vmatprep.subr.mxu0 0.0
        %1751 = vmatpush1.msra.mxu0 0.0
        %1752 = vmatprep.subr.mxu0 0.0
        %1753 = vmatpush1.msra.mxu0 0.0
        %1754 = vmatprep.subr.mxu0 0.0
        %1755 = vmatpush1.msra.mxu0 0.0
        %1756 = vmatprep.subr.mxu0 0.0
        %1757 = vmatpush1.msra.mxu0 0.0
        %1758 = vmatprep.subr.mxu0 0.0
        %1759 = vmatpush1.msra.mxu0 0.0
        %1760 = vmatprep.subr.mxu0 0.0
        %1761 = vmatpush1.msra.mxu0 0.0
        %1762 = vmatprep.subr.mxu0 0.0
        %1763 = vmatpush1.msra.mxu0 0.0
        %1764 = vmatprep.mubr.f32.mxu0 0.0
        %v1765 = vand.u32 %v1387, 4294901760
        %v1766 = vsub.f32 %v1387, %v1765
        %1767 = vmatmul.mubr.f32.gmra.mrb[0].mxu0 %v1766
        %v1768 = vpop.f32.mrb[0].mxu0
        %v1769 = vadd.f32 %v1643, %v1768
        %v1770 = vpop.f32.mrb[0].mxu0
        %v1771 = vadd.f32 %v1645, %v1770
        %1772 = vmatprep.mubr.f32.mxu0 0.0
        %v1773 = vand.u32 %v1390, 4294901760
        %v1774 = vsub.f32 %v1390, %v1773
        %1775 = vmatmul.mubr.f32.gmra.mrb[0].mxu0 %v1774
        %v1776 = vpop.f32.mrb[0].mxu0
        %v1777 = vadd.f32 %v1650, %v1776
        %v1778 = vpop.f32.mrb[0].mxu0
        %v1779 = vadd.f32 %v1652, %v1778
        %1780 = vmatprep.mubr.f32.mxu0 0.0
        %v1781 = vand.u32 %v1393, 4294901760
        %v1782 = vsub.f32 %v1393, %v1781
        %1783 = vmatmul.mubr.f32.gmra.mrb[0].mxu0 %v1782
        %v1784 = vpop.f32.mrb[0].mxu0
        %v1785 = vadd.f32 %v1657, %v1784
        %v1786 = vpop.f32.mrb[0].mxu0
        %v1787 = vadd.f32 %v1659, %v1786
        %1788 = vmatprep.mubr.f32.mxu0 0.0
        %v1789 = vand.u32 %v1396, 4294901760
        %v1790 = vsub.f32 %v1396, %v1789
        %1791 = vmatmul.mubr.f32.gmra.mrb[0].mxu0 %v1790
        %v1792 = vpop.f32.mrb[0].mxu0
        %v1793 = vadd.f32 %v1664, %v1792
        %v1794 = vpop.f32.mrb[0].mxu0
        %v1795 = vadd.f32 %v1666, %v1794
        %1796 = vmatprep.mubr.f32.mxu0 0.0
        %v1797 = vand.u32 %v1399, 4294901760
        %v1798 = vsub.f32 %v1399, %v1797
        %1799 = vmatmul.mubr.f32.gmra.mrb[0].mxu0 %v1798
        %v1800 = vpop.f32.mrb[0].mxu0
        %v1801 = vadd.f32 %v1671, %v1800
        %v1802 = vpop.f32.mrb[0].mxu0
        %v1803 = vadd.f32 %v1673, %v1802
        %1804 = vmatprep.mubr.f32.mxu0 0.0
        %v1805 = vand.u32 %v1402, 4294901760
        %v1806 = vsub.f32 %v1402, %v1805
        %1807 = vmatmul.mubr.f32.gmra.mrb[0].mxu0 %v1806
        %v1808 = vpop.f32.mrb[0].mxu0
        %v1809 = vadd.f32 %v1678, %v1808
        %v1810 = vpop.f32.mrb[0].mxu0
        %v1811 = vadd.f32 %v1680, %v1810
        %1812 = vmatprep.mubr.f32.mxu0 0.0
        %v1813 = vand.u32 %v1405, 4294901760
        %v1814 = vsub.f32 %v1405, %v1813
        %1815 = vmatmul.mubr.f32.gmra.mrb[0].mxu0 %v1814
        %v1816 = vpop.f32.mrb[0].mxu0
        %v1817 = vadd.f32 %v1685, %v1816
        %v1818 = vpop.f32.mrb[0].mxu0
        %v1819 = vadd.f32 %v1687, %v1818
        %1820 = vmatprep.mubr.f32.mxu0 0.0
        %v1821 = vand.u32 %v1408, 4294901760
        %v1822 = vsub.f32 %v1408, %v1821
        %1823 = vmatmul.mubr.f32.gmra.mrb[0].mxu0 %v1822
        %v1824 = vpop.f32.mrb[0].mxu0
        %v1825 = vadd.f32 %v1692, %v1824
        %v1826 = vpop.f32.mrb[0].mxu0
        %v1827 = vadd.f32 %v1694, %v1826
        %1828 = vdwg.mxu0
        %v1829 = vand.u32 %v402, 4294901760
        %1830 = vmatprep.subr.mxu0 %v1829
        %v1831 = vand.u32 %v400, 4294901760
        %1832 = vmatpush1.msra.mxu0 %v1831
        %1833 = vmatprep.subr.mxu0 0.0
        %1834 = vmatpush1.msra.mxu0 0.0
        %1835 = vmatprep.subr.mxu0 0.0
        %1836 = vmatpush1.msra.mxu0 0.0
        %1837 = vmatprep.subr.mxu0 0.0
        %1838 = vmatpush1.msra.mxu0 0.0
        %1839 = vmatprep.subr.mxu0 0.0
        %1840 = vmatpush1.msra.mxu0 0.0
        %1841 = vmatprep.subr.mxu0 0.0
        %1842 = vmatpush1.msra.mxu0 0.0
        %1843 = vmatprep.subr.mxu0 0.0
        %1844 = vmatpush1.msra.mxu0 0.0
        %1845 = vmatprep.subr.mxu0 0.0
        %1846 = vmatpush1.msra.mxu0 0.0
        %1847 = vmatprep.subr.mxu0 0.0
        %1848 = vmatpush1.msra.mxu0 0.0
        %1849 = vmatprep.subr.mxu0 0.0
        %1850 = vmatpush1.msra.mxu0 0.0
        %1851 = vmatprep.subr.mxu0 0.0
        %1852 = vmatpush1.msra.mxu0 0.0
        %1853 = vmatprep.subr.mxu0 0.0
        %1854 = vmatpush1.msra.mxu0 0.0
        %1855 = vmatprep.subr.mxu0 0.0
        %1856 = vmatpush1.msra.mxu0 0.0
        %1857 = vmatprep.subr.mxu0 0.0
        %1858 = vmatpush1.msra.mxu0 0.0
        %1859 = vmatprep.subr.mxu0 0.0
        %1860 = vmatpush1.msra.mxu0 0.0
        %1861 = vmatprep.subr.mxu0 0.0
        %1862 = vmatpush1.msra.mxu0 0.0
        %1863 = vmatprep.subr.mxu0 0.0
        %1864 = vmatpush1.msra.mxu0 0.0
        %1865 = vmatprep.subr.mxu0 0.0
        %1866 = vmatpush1.msra.mxu0 0.0
        %1867 = vmatprep.subr.mxu0 0.0
        %1868 = vmatpush1.msra.mxu0 0.0
        %1869 = vmatprep.subr.mxu0 0.0
        %1870 = vmatpush1.msra.mxu0 0.0
        %1871 = vmatprep.subr.mxu0 0.0
        %1872 = vmatpush1.msra.mxu0 0.0
        %1873 = vmatprep.subr.mxu0 0.0
        %1874 = vmatpush1.msra.mxu0 0.0
        %1875 = vmatprep.subr.mxu0 0.0
        %1876 = vmatpush1.msra.mxu0 0.0
        %1877 = vmatprep.subr.mxu0 0.0
        %1878 = vmatpush1.msra.mxu0 0.0
        %1879 = vmatprep.subr.mxu0 0.0
        %1880 = vmatpush1.msra.mxu0 0.0
        %1881 = vmatprep.subr.mxu0 0.0
        %1882 = vmatpush1.msra.mxu0 0.0
        %1883 = vmatprep.subr.mxu0 0.0
        %1884 = vmatpush1.msra.mxu0 0.0
        %1885 = vmatprep.subr.mxu0 0.0
        %1886 = vmatpush1.msra.mxu0 0.0
        %1887 = vmatprep.subr.mxu0 0.0
        %1888 = vmatpush1.msra.mxu0 0.0
        %1889 = vmatprep.subr.mxu0 0.0
        %1890 = vmatpush1.msra.mxu0 0.0
        %1891 = vmatprep.subr.mxu0 0.0
        %1892 = vmatpush1.msra.mxu0 0.0
        %1893 = vmatprep.subr.mxu0 0.0
        %1894 = vmatpush1.msra.mxu0 0.0
        %1895 = vmatprep.mubr.f32.mxu0 0.0
        %v1896 = vand.u32 %v1387, 4294901760
        %v1897 = vsub.f32 %v1387, %v1896
        %v1898 = vand.u32 %v1897, 4294901760
        %1899 = vmatmul.mubr.f32.gmra.mrb[0].mxu0 %v1898
        %v1900 = vpop.f32.mrb[0].mxu0
        %v1901 = vadd.f32 %v1769, %v1900
        %v1902 = vpop.f32.mrb[0].mxu0
        %v1903 = vadd.f32 %v1771, %v1902
        %1904 = vmatprep.mubr.f32.mxu0 0.0
        %v1905 = vand.u32 %v1390, 4294901760
        %v1906 = vsub.f32 %v1390, %v1905
        %v1907 = vand.u32 %v1906, 4294901760
        %1908 = vmatmul.mubr.f32.gmra.mrb[0].mxu0 %v1907
        %v1909 = vpop.f32.mrb[0].mxu0
        %v1910 = vadd.f32 %v1777, %v1909
        %v1911 = vpop.f32.mrb[0].mxu0
        %v1912 = vadd.f32 %v1779, %v1911
        %1913 = vmatprep.mubr.f32.mxu0 0.0
        %v1914 = vand.u32 %v1393, 4294901760
        %v1915 = vsub.f32 %v1393, %v1914
        %v1916 = vand.u32 %v1915, 4294901760
        %1917 = vmatmul.mubr.f32.gmra.mrb[0].mxu0 %v1916
        %v1918 = vpop.f32.mrb[0].mxu0
        %v1919 = vadd.f32 %v1785, %v1918
        %v1920 = vpop.f32.mrb[0].mxu0
        %v1921 = vadd.f32 %v1787, %v1920
        %1922 = vmatprep.mubr.f32.mxu0 0.0
        %v1923 = vand.u32 %v1396, 4294901760
        %v1924 = vsub.f32 %v1396, %v1923
        %v1925 = vand.u32 %v1924, 4294901760
        %1926 = vmatmul.mubr.f32.gmra.mrb[0].mxu0 %v1925
        %v1927 = vpop.f32.mrb[0].mxu0
        %v1928 = vadd.f32 %v1793, %v1927
        %v1929 = vpop.f32.mrb[0].mxu0
        %v1930 = vadd.f32 %v1795, %v1929
        %1931 = vmatprep.mubr.f32.mxu0 0.0
        %v1932 = vand.u32 %v1399, 4294901760
        %v1933 = vsub.f32 %v1399, %v1932
        %v1934 = vand.u32 %v1933, 4294901760
        %1935 = vmatmul.mubr.f32.gmra.mrb[0].mxu0 %v1934
        %v1936 = vpop.f32.mrb[0].mxu0
        %v1937 = vadd.f32 %v1801, %v1936
        %v1938 = vpop.f32.mrb[0].mxu0
        %v1939 = vadd.f32 %v1803, %v1938
        %1940 = vmatprep.mubr.f32.mxu0 0.0
        %v1941 = vand.u32 %v1402, 4294901760
        %v1942 = vsub.f32 %v1402, %v1941
        %v1943 = vand.u32 %v1942, 4294901760
        %1944 = vmatmul.mubr.f32.gmra.mrb[0].mxu0 %v1943
        %v1945 = vpop.f32.mrb[0].mxu0
        %v1946 = vadd.f32 %v1809, %v1945
        %v1947 = vpop.f32.mrb[0].mxu0
        %v1948 = vadd.f32 %v1811, %v1947
        %1949 = vmatprep.mubr.f32.mxu0 0.0
        %v1950 = vand.u32 %v1405, 4294901760
        %v1951 = vsub.f32 %v1405, %v1950
        %v1952 = vand.u32 %v1951, 4294901760
        %1953 = vmatmul.mubr.f32.gmra.mrb[0].mxu0 %v1952
        %v1954 = vpop.f32.mrb[0].mxu0
        %v1955 = vadd.f32 %v1817, %v1954
        %v1956 = vpop.f32.mrb[0].mxu0
        %v1957 = vadd.f32 %v1819, %v1956
        %1958 = vmatprep.mubr.f32.mxu0 0.0
        %v1959 = vand.u32 %v1408, 4294901760
        %v1960 = vsub.f32 %v1408, %v1959
        %v1961 = vand.u32 %v1960, 4294901760
        %1962 = vmatmul.mubr.f32.gmra.mrb[0].mxu0 %v1961
        %v1963 = vpop.f32.mrb[0].mxu0
        %v1964 = vadd.f32 %v1825, %v1963
        %v1965 = vpop.f32.mrb[0].mxu0
        %v1966 = vadd.f32 %v1827, %v1965
        %1967 = vdwg.mxu0
        %v1968 = vand.u32 %v402, 4294901760
        %v1969 = vsub.f32 %v402, %v1968
        %v1970 = vand.u32 %v1969, 4294901760
        %1971 = vmatprep.subr.mxu0 %v1970
        %v1972 = vand.u32 %v400, 4294901760
        %v1973 = vsub.f32 %v400, %v1972
        %v1974 = vand.u32 %v1973, 4294901760
        %1975 = vmatpush1.msra.mxu0 %v1974
        %1976 = vmatprep.subr.mxu0 0.0
        %1977 = vmatpush1.msra.mxu0 0.0
        %1978 = vmatprep.subr.mxu0 0.0
        %1979 = vmatpush1.msra.mxu0 0.0
        %1980 = vmatprep.subr.mxu0 0.0
        %1981 = vmatpush1.msra.mxu0 0.0
        %1982 = vmatprep.subr.mxu0 0.0
        %1983 = vmatpush1.msra.mxu0 0.0
        %1984 = vmatprep.subr.mxu0 0.0
        %1985 = vmatpush1.msra.mxu0 0.0
        %1986 = vmatprep.subr.mxu0 0.0
        %1987 = vmatpush1.msra.mxu0 0.0
        %1988 = vmatprep.subr.mxu0 0.0
        %1989 = vmatpush1.msra.mxu0 0.0
        %1990 = vmatprep.subr.mxu0 0.0
        %1991 = vmatpush1.msra.mxu0 0.0
        %1992 = vmatprep.subr.mxu0 0.0
        %1993 = vmatpush1.msra.mxu0 0.0
        %1994 = vmatprep.subr.mxu0 0.0
        %1995 = vmatpush1.msra.mxu0 0.0
        %1996 = vmatprep.subr.mxu0 0.0
        %1997 = vmatpush1.msra.mxu0 0.0
        %1998 = vmatprep.subr.mxu0 0.0
        %1999 = vmatpush1.msra.mxu0 0.0
        %2000 = vmatprep.subr.mxu0 0.0
        %2001 = vmatpush1.msra.mxu0 0.0
        %2002 = vmatprep.subr.mxu0 0.0
        %2003 = vmatpush1.msra.mxu0 0.0
        %2004 = vmatprep.subr.mxu0 0.0
        %2005 = vmatpush1.msra.mxu0 0.0
        %2006 = vmatprep.subr.mxu0 0.0
        %2007 = vmatpush1.msra.mxu0 0.0
        %2008 = vmatprep.subr.mxu0 0.0
        %2009 = vmatpush1.msra.mxu0 0.0
        %2010 = vmatprep.subr.mxu0 0.0
        %2011 = vmatpush1.msra.mxu0 0.0
        %2012 = vmatprep.subr.mxu0 0.0
        %2013 = vmatpush1.msra.mxu0 0.0
        %2014 = vmatprep.subr.mxu0 0.0
        %2015 = vmatpush1.msra.mxu0 0.0
        %2016 = vmatprep.subr.mxu0 0.0
        %2017 = vmatpush1.msra.mxu0 0.0
        %2018 = vmatprep.subr.mxu0 0.0
        %2019 = vmatpush1.msra.mxu0 0.0
        %2020 = vmatprep.subr.mxu0 0.0
        %2021 = vmatpush1.msra.mxu0 0.0
        %2022 = vmatprep.subr.mxu0 0.0
        %2023 = vmatpush1.msra.mxu0 0.0
        %2024 = vmatprep.subr.mxu0 0.0
        %2025 = vmatpush1.msra.mxu0 0.0
        %2026 = vmatprep.subr.mxu0 0.0
        %2027 = vmatpush1.msra.mxu0 0.0
        %2028 = vmatprep.subr.mxu0 0.0
        %2029 = vmatpush1.msra.mxu0 0.0
        %2030 = vmatprep.subr.mxu0 0.0
        %2031 = vmatpush1.msra.mxu0 0.0
        %2032 = vmatprep.subr.mxu0 0.0
        %2033 = vmatpush1.msra.mxu0 0.0
        %2034 = vmatprep.subr.mxu0 0.0
        %2035 = vmatpush1.msra.mxu0 0.0
        %2036 = vmatprep.subr.mxu0 0.0
        %2037 = vmatpush1.msra.mxu0 0.0
        %2038 = vmatprep.mubr.f32.mxu0 0.0
        %v2039 = vand.u32 %v1387, 4294901760
        %2040 = vmatmul.mubr.f32.gmra.mrb[0].mxu0 %v2039
        %v2041 = vpop.f32.mrb[0].mxu0
        %v2042 = vadd.f32 %v1901, %v2041
        %v2043 = vpop.f32.mrb[0].mxu0
        %v2044 = vadd.f32 %v1903, %v2043
        %2045 = vmatprep.mubr.f32.mxu0 0.0
        %v2046 = vand.u32 %v1390, 4294901760
        %2047 = vmatmul.mubr.f32.gmra.mrb[0].mxu0 %v2046
        %v2048 = vpop.f32.mrb[0].mxu0
        %v2049 = vadd.f32 %v1910, %v2048
        %v2050 = vpop.f32.mrb[0].mxu0
        %v2051 = vadd.f32 %v1912, %v2050
        %2052 = vmatprep.mubr.f32.mxu0 0.0
        %v2053 = vand.u32 %v1393, 4294901760
        %2054 = vmatmul.mubr.f32.gmra.mrb[0].mxu0 %v2053
        %v2055 = vpop.f32.mrb[0].mxu0
        %v2056 = vadd.f32 %v1919, %v2055
        %v2057 = vpop.f32.mrb[0].mxu0
        %v2058 = vadd.f32 %v1921, %v2057
        %2059 = vmatprep.mubr.f32.mxu0 0.0
        %v2060 = vand.u32 %v1396, 4294901760
        %2061 = vmatmul.mubr.f32.gmra.mrb[0].mxu0 %v2060
        %v2062 = vpop.f32.mrb[0].mxu0
        %v2063 = vadd.f32 %v1928, %v2062
        %v2064 = vpop.f32.mrb[0].mxu0
        %v2065 = vadd.f32 %v1930, %v2064
        %2066 = vmatprep.mubr.f32.mxu0 0.0
        %v2067 = vand.u32 %v1399, 4294901760
        %2068 = vmatmul.mubr.f32.gmra.mrb[0].mxu0 %v2067
        %v2069 = vpop.f32.mrb[0].mxu0
        %v2070 = vadd.f32 %v1937, %v2069
        %v2071 = vpop.f32.mrb[0].mxu0
        %v2072 = vadd.f32 %v1939, %v2071
        %2073 = vmatprep.mubr.f32.mxu0 0.0
        %v2074 = vand.u32 %v1402, 4294901760
        %2075 = vmatmul.mubr.f32.gmra.mrb[0].mxu0 %v2074
        %v2076 = vpop.f32.mrb[0].mxu0
        %v2077 = vadd.f32 %v1946, %v2076
        %v2078 = vpop.f32.mrb[0].mxu0
        %v2079 = vadd.f32 %v1948, %v2078
        %2080 = vmatprep.mubr.f32.mxu0 0.0
        %v2081 = vand.u32 %v1405, 4294901760
        %2082 = vmatmul.mubr.f32.gmra.mrb[0].mxu0 %v2081
        %v2083 = vpop.f32.mrb[0].mxu0
        %v2084 = vadd.f32 %v1955, %v2083
        %v2085 = vpop.f32.mrb[0].mxu0
        %v2086 = vadd.f32 %v1957, %v2085
        %2087 = vmatprep.mubr.f32.mxu0 0.0
        %v2088 = vand.u32 %v1408, 4294901760
        %2089 = vmatmul.mubr.f32.gmra.mrb[0].mxu0 %v2088
        %v2090 = vpop.f32.mrb[0].mxu0
        %v2091 = vadd.f32 %v1964, %v2090
        %v2092 = vpop.f32.mrb[0].mxu0
        %v2093 = vadd.f32 %v1966, %v2092
        %2094 = vdwg.mxu0
        %v2095 = vand.u32 %v402, 4294901760
        %2096 = vmatprep.subr.mxu0 %v2095
        %v2097 = vand.u32 %v400, 4294901760
        %2098 = vmatpush1.msra.mxu0 %v2097
        %2099 = vmatprep.subr.mxu0 0.0
        %2100 = vmatpush1.msra.mxu0 0.0
        %2101 = vmatprep.subr.mxu0 0.0
        %2102 = vmatpush1.msra.mxu0 0.0
        %2103 = vmatprep.subr.mxu0 0.0
        %2104 = vmatpush1.msra.mxu0 0.0
        %2105 = vmatprep.subr.mxu0 0.0
        %2106 = vmatpush1.msra.mxu0 0.0
        %2107 = vmatprep.subr.mxu0 0.0
        %2108 = vmatpush1.msra.mxu0 0.0
        %2109 = vmatprep.subr.mxu0 0.0
        %2110 = vmatpush1.msra.mxu0 0.0
        %2111 = vmatprep.subr.mxu0 0.0
        %2112 = vmatpush1.msra.mxu0 0.0
        %2113 = vmatprep.subr.mxu0 0.0
        %2114 = vmatpush1.msra.mxu0 0.0
        %2115 = vmatprep.subr.mxu0 0.0
        %2116 = vmatpush1.msra.mxu0 0.0
        %2117 = vmatprep.subr.mxu0 0.0
        %2118 = vmatpush1.msra.mxu0 0.0
        %2119 = vmatprep.subr.mxu0 0.0
        %2120 = vmatpush1.msra.mxu0 0.0
        %2121 = vmatprep.subr.mxu0 0.0
        %2122 = vmatpush1.msra.mxu0 0.0
        %2123 = vmatprep.subr.mxu0 0.0
        %2124 = vmatpush1.msra.mxu0 0.0
        %2125 = vmatprep.subr.mxu0 0.0
        %2126 = vmatpush1.msra.mxu0 0.0
        %2127 = vmatprep.subr.mxu0 0.0
        %2128 = vmatpush1.msra.mxu0 0.0
        %2129 = vmatprep.subr.mxu0 0.0
        %2130 = vmatpush1.msra.mxu0 0.0
        %2131 = vmatprep.subr.mxu0 0.0
        %2132 = vmatpush1.msra.mxu0 0.0
        %2133 = vmatprep.subr.mxu0 0.0
        %2134 = vmatpush1.msra.mxu0 0.0
        %2135 = vmatprep.subr.mxu0 0.0
        %2136 = vmatpush1.msra.mxu0 0.0
        %2137 = vmatprep.subr.mxu0 0.0
        %2138 = vmatpush1.msra.mxu0 0.0
        %2139 = vmatprep.subr.mxu0 0.0
        %2140 = vmatpush1.msra.mxu0 0.0
        %2141 = vmatprep.subr.mxu0 0.0
        %2142 = vmatpush1.msra.mxu0 0.0
        %2143 = vmatprep.subr.mxu0 0.0
        %2144 = vmatpush1.msra.mxu0 0.0
        %2145 = vmatprep.subr.mxu0 0.0
        %2146 = vmatpush1.msra.mxu0 0.0
        %2147 = vmatprep.subr.mxu0 0.0
        %2148 = vmatpush1.msra.mxu0 0.0
        %2149 = vmatprep.subr.mxu0 0.0
        %2150 = vmatpush1.msra.mxu0 0.0
        %2151 = vmatprep.subr.mxu0 0.0
        %2152 = vmatpush1.msra.mxu0 0.0
        %2153 = vmatprep.subr.mxu0 0.0
        %2154 = vmatpush1.msra.mxu0 0.0
        %2155 = vmatprep.subr.mxu0 0.0
        %2156 = vmatpush1.msra.mxu0 0.0
        %2157 = vmatprep.subr.mxu0 0.0
        %2158 = vmatpush1.msra.mxu0 0.0
        %2159 = vmatprep.subr.mxu0 0.0
        %2160 = vmatpush1.msra.mxu0 0.0
        %2161 = vmatprep.mubr.f32.mxu0 0.0
        %v2162 = vand.u32 %v1387, 4294901760
        %2163 = vmatmul.mubr.f32.gmra.mrb[0].mxu0 %v2162
        %v2164 = vpop.f32.mrb[0].mxu0
        %v2165 = vadd.f32 %v2042, %v2164
        %v2166 = vpop.f32.mrb[0].mxu0
        %v2167 = vadd.f32 %v2044, %v2166
        %2168 = vmatprep.mubr.f32.mxu0 0.0
        %v2169 = vand.u32 %v1390, 4294901760
        %2170 = vmatmul.mubr.f32.gmra.mrb[0].mxu0 %v2169
        %v2171 = vpop.f32.mrb[0].mxu0
        %v2172 = vadd.f32 %v2049, %v2171
        %v2173 = vpop.f32.mrb[0].mxu0
        %v2174 = vadd.f32 %v2051, %v2173
        %2175 = vmatprep.mubr.f32.mxu0 0.0
        %v2176 = vand.u32 %v1393, 4294901760
        %2177 = vmatmul.mubr.f32.gmra.mrb[0].mxu0 %v2176
        %v2178 = vpop.f32.mrb[0].mxu0
        %v2179 = vadd.f32 %v2056, %v2178
        %v2180 = vpop.f32.mrb[0].mxu0
        %v2181 = vadd.f32 %v2058, %v2180
        %2182 = vmatprep.mubr.f32.mxu0 0.0
        %v2183 = vand.u32 %v1396, 4294901760
        %2184 = vmatmul.mubr.f32.gmra.mrb[0].mxu0 %v2183
        %v2185 = vpop.f32.mrb[0].mxu0
        %v2186 = vadd.f32 %v2063, %v2185
        %v2187 = vpop.f32.mrb[0].mxu0
        %v2188 = vadd.f32 %v2065, %v2187
        %2189 = vmatprep.mubr.f32.mxu0 0.0
        %v2190 = vand.u32 %v1399, 4294901760
        %2191 = vmatmul.mubr.f32.gmra.mrb[0].mxu0 %v2190
        %v2192 = vpop.f32.mrb[0].mxu0
        %v2193 = vadd.f32 %v2070, %v2192
        %v2194 = vpop.f32.mrb[0].mxu0
        %v2195 = vadd.f32 %v2072, %v2194
        %2196 = vmatprep.mubr.f32.mxu0 0.0
        %v2197 = vand.u32 %v1402, 4294901760
        %2198 = vmatmul.mubr.f32.gmra.mrb[0].mxu0 %v2197
        %v2199 = vpop.f32.mrb[0].mxu0
        %v2200 = vadd.f32 %v2077, %v2199
        %v2201 = vpop.f32.mrb[0].mxu0
        %v2202 = vadd.f32 %v2079, %v2201
        %2203 = vmatprep.mubr.f32.mxu0 0.0
        %v2204 = vand.u32 %v1405, 4294901760
        %2205 = vmatmul.mubr.f32.gmra.mrb[0].mxu0 %v2204
        %v2206 = vpop.f32.mrb[0].mxu0
        %v2207 = vadd.f32 %v2084, %v2206
        %v2208 = vpop.f32.mrb[0].mxu0
        %v2209 = vadd.f32 %v2086, %v2208
        %2210 = vmatprep.mubr.f32.mxu0 0.0
        %v2211 = vand.u32 %v1408, 4294901760
        %2212 = vmatmul.mubr.f32.gmra.mrb[0].mxu0 %v2211
        %v2213 = vpop.f32.mrb[0].mxu0
        %v2214 = vadd.f32 %v2091, %v2213
        %v2215 = vpop.f32.mrb[0].mxu0
        %v2216 = vadd.f32 %v2093, %v2215
        %2217 = vdwg.mxu0
        %2218 = vst [vmem:[%s282] sm:$0xff] %v2165
        %2219 = vst [vmem:[%s282 + $0x8] sm:$0xff] %v2167
        %2220 = vst [vmem:[%s282 + $0x10] sm:$0xff] %v2172
        %2221 = vst [vmem:[%s282 + $0x18] sm:$0xff] %v2174
        %2222 = vst [vmem:[%s282 + $0x20] sm:$0xff] %v2179
        %2223 = vst [vmem:[%s282 + $0x28] sm:$0xff] %v2181
        %2224 = vst [vmem:[%s282 + $0x30] sm:$0xff] %v2186
        %2225 = vst [vmem:[%s282 + $0x38] sm:$0xff] %v2188
        %2226 = vst [vmem:[%s282 + $0x40] sm:$0xff] %v2193
        %2227 = vst [vmem:[%s282 + $0x48] sm:$0xff] %v2195
        %2228 = vst [vmem:[%s282 + $0x50] sm:$0xff] %v2200
        %2229 = vst [vmem:[%s282 + $0x58] sm:$0xff] %v2202
        %2230 = vst [vmem:[%s282 + $0x60] sm:$0xff] %v2207
        %2231 = vst [vmem:[%s282 + $0x68] sm:$0xff] %v2209
        %2232 = vst [vmem:[%s282 + $0x70] sm:$0xff] %v2214
        %2233 = vst [vmem:[%s282 + $0x78] sm:$0xff] %v2216
        %s2234 = sand.u32 %s158, 1
        %s2235 = scalar_lea.sflag [#allocation3], %s2234
        %s2236 = sand.u32 %s158, 1
        %s2237 = smul.addr %s2236, 160
        %s2238 = scalar_lea.vmem [#allocation2], %s2237
        %s2239 = sand.u32 %s186, 1
        %s2240 = scalar_lea.sflag [#allocation5], %s2239
        %s2241 = sand.u32 %s186, 1
        %s2242 = smul.addr %s2241, 128
        %s2243 = scalar_lea.vmem [#allocation4], %s2242
        // Predicated region
        $region41: #{tpu_custom_call.1} parent=39 // pred_check
          %p2244 = pneg %p168
        $region42: #{tpu_custom_call.1} parent=39 // pred_check_branch
          %2246 = sbr.rel (%p2244) target = $region44
        $region43: #{tpu_custom_call.1} parent=39 // pred_region
          %s2247 = smul.u32 2, %s29
          %s2249 = ssub.s32 2560, 2560
          %2250 = vsyncadd %s2235, %s2249
          %s2251 = smul.addr %s28, 20
          %s2252 = sadd.s32 %s2247, %s2251
          %s2253 = smul.addr %s2252, 128
          %s2254 = scalar_lea.hbm %s5, %s2253
          %s2255 = sshll.u32 %s2238, 4
          %s2256 = int_to_ptr.vmem [resolvable:$true] %s2255
          %2261 = dma.vmem_to_hbm [thread:$0]  %s2256, 2560, %s2254, %s2235, 256, 256, 16
        $region44: #{tpu_custom_call.1} parent=39 // pred_fallthru
          _
        // Predicated region
        $region45: #{tpu_custom_call.1} parent=39 // pred_check
          %p2262 = pneg %p196
        $region46: #{tpu_custom_call.1} parent=39 // pred_check_branch
          %2264 = sbr.rel (%p2262) target = $region48
        $region47: #{tpu_custom_call.1} parent=39 // pred_region
          %s2265 = smul.u32 2, %s29
          %s2267 = ssub.s32 2048, 2048
          %2268 = vsyncadd %s2240, %s2267
          %s2269 = smul.addr %s28, 16
          %s2270 = sadd.s32 %s2265, %s2269
          %s2271 = smul.addr %s2270, 128
          %s2272 = scalar_lea.hbm %s6, %s2271
          %s2273 = sshll.u32 %s2243, 4
          %s2274 = int_to_ptr.vmem [resolvable:$true] %s2273
          %2279 = dma.vmem_to_hbm [thread:$0]  %s2274, 2048, %s2272, %s2240, 256, 256, 16
        $region48: #{tpu_custom_call.1} parent=39 // pred_fallthru
          _
      $region40: #{tpu_custom_call.1} parent=5 // pred_fallthru
        _
      %p2280 = scmp.le.s32.totalorder 2, %s19
      // Predicated region
      $region49: #{tpu_custom_call.1} parent=5 // pred_check
        %p2281 = pneg %p2280
      $region50: #{tpu_custom_call.1} parent=5 // pred_check_branch
        %2283 = sbr.rel (%p2281) target = $region52
      $region51: #{tpu_custom_call.1} parent=5 // pred_region
        %s2284 = ssub.s32 %s19, 2
        // Predicated region
        $region53: #{tpu_custom_call.1} parent=51 // pred_check
          %p2285 = pneg %p174
        $region54: #{tpu_custom_call.1} parent=51 // pred_check_branch
          %2287 = sbr.rel (%p2285) target = $region56
        $region55: #{tpu_custom_call.1} parent=51 // pred_region
          %s2288 = sand.u32 %s159, 1
          %s2289 = scalar_lea.sflag [#allocation3], %s2288
          %s2290 = sand.u32 %s159, 1
          %s2291 = smul.addr %s2290, 160
          %s2292 = scalar_lea.vmem [#allocation2], %s2291
          %2293 = dma.done %s2289, 2560
        $region56: #{tpu_custom_call.1} parent=51 // pred_fallthru
          _
        // Predicated region
        $region57: #{tpu_custom_call.1} parent=51 // pred_check
          %p2294 = pneg %p202
        $region58: #{tpu_custom_call.1} parent=51 // pred_check_branch
          %2296 = sbr.rel (%p2294) target = $region60
        $region59: #{tpu_custom_call.1} parent=51 // pred_region
          %s2297 = sand.u32 %s187, 1
          %s2298 = scalar_lea.sflag [#allocation5], %s2297
          %s2299 = sand.u32 %s187, 1
          %s2300 = smul.addr %s2299, 128
          %s2301 = scalar_lea.vmem [#allocation4], %s2300
          %2302 = dma.done %s2298, 2048
        $region60: #{tpu_custom_call.1} parent=51 // pred_fallthru
          _
      $region52: #{tpu_custom_call.1} parent=5 // pred_fallthru
        _
    $region6: #{tpu_custom_call.1} parent=1 // loop_footer
      %s23 = sadd.s32 1, %s19
    $region7: #{tpu_custom_call.1} parent=1 // loop_footer_branch
      %18 = sbr.rel target = $region3
    $region8: #{tpu_custom_call.1} parent=1 // loop_exit
      _
    %2303 = vsyncpa [#allocation3], 1
    %s2304 = scalar_lea.sflag [#allocation3], 1
    %2305 = vsyncpa %s2304, 1
    %2306 = vsyncpa [#allocation5], 1
    %s2307 = scalar_lea.sflag [#allocation5], 1
    %2308 = vsyncpa %s2307, 1

</llo_original>
